<compile_context>
chip_gen: v6e
topology: v6e:2x2x1
jax: 0.10.0
libtpu: 0.0.40
codegen_flags: <defaults>
</compile_context>

<pallas_src>
import functools

import jax
import jax.numpy as jnp
from jax import lax
from jax.experimental import pallas as pl
from jax.experimental.pallas import tpu as pltpu


def _round_up(x: int, m: int) -> int:
    return (x + m - 1) // m * m


# ----------------------------------------------------------------------------
# Pallas kernel: (optional fused 2x2 max over phase inputs) + 3x3 'same' conv
# + bias + ReLU, as 9 tap matmuls over a lane-dense flattened spatial layout.
# ----------------------------------------------------------------------------
def _make_conv3x3_kernel(n_in: int, w_pad: int, tq: int, win_w: int):
    def kernel(*refs):
        x_refs = refs[:n_in]          # each (1, Cin, Lp), compute dtype (bf16)
        w_ref = refs[n_in]            # (9, Cout, Cin),    compute dtype (bf16)
        b_ref = refs[n_in + 1]        # (Cout, 1), f32
        o_ref = refs[n_in + 2]        # (1, Cout, tq), f32

        t = pl.program_id(1)
        q0 = pl.multiple_of(t * tq, tq)          # lane-aligned tile start

        # Load this tile's window (tq + halo lanes).  For the branched path
        # the 2x2 maxpool is fused here as an elementwise max over the 4
        # pooling phases (pure VPU work that rides under the matmuls).
        win = x_refs[0][0, :, pl.ds(q0, win_w)]
        for r in x_refs[1:]:
            win = jnp.maximum(win, r[0, :, pl.ds(q0, win_w)])

        cout = o_ref.shape[1]
        # Fold the bias into the accumulator init (saves a VPU pass).
        acc = jnp.broadcast_to(b_ref[...], (cout, tq)).astype(jnp.float32)
        for kh in range(3):
            for kw in range(3):
                off = kh * w_pad + kw                      # static lane offset
                xs = win[:, off:off + tq]                  # (Cin, tq)
                acc = acc + jnp.dot(w_ref[kh * 3 + kw], xs,
                                    preferred_element_type=jnp.float32)
        o_ref[0] = jnp.maximum(acc, 0.0).astype(o_ref.dtype)

    return kernel


def _conv3x3_relu_flat(flats, w_taps, bias, *, w_pad, tq, q_tiles, out_dtype):
    """flats: list of (N, Cin, Lp) padded/flattened activations (max-fused in
    the kernel), w_taps: (9, Cout, Cin), bias: (Cout, 1).
    Returns (N, Cout, q_tiles * tq)."""
    n_in = len(flats)
    N, cin, lp = flats[0].shape
    cout = w_taps.shape[1]
    win_w = tq + (lp - q_tiles * tq)                       # tile + halo lanes

    kernel = _make_conv3x3_kernel(n_in, w_pad, tq, win_w)

    in_specs = [pl.BlockSpec((1, cin, lp), lambda n, t: (n, 0, 0))
                for _ in range(n_in)]
    in_specs += [pl.BlockSpec((9, cout, cin), lambda n, t: (0, 0, 0)),
                 pl.BlockSpec((cout, 1), lambda n, t: (0, 0))]
    out_specs = pl.BlockSpec((1, cout, tq), lambda n, t: (n, 0, t))

    itemsize = jnp.dtype(flats[0].dtype).itemsize
    block_bytes = (n_in * cin * lp * itemsize              # resident inputs
                   + 9 * cout * 128 * itemsize             # weights (lane-padded)
                   + cout * 4                              # bias
                   + cout * tq * 4)                        # output tile
    # Double buffering + headroom.  (Keep well under 64 MiB on v7x.)
    vmem_limit = int(max(16 * 2**20, 4 * block_bytes))

    return pl.pallas_call(
        kernel,
        out_shape=jax.ShapeDtypeStruct((N, cout, q_tiles * tq), out_dtype),
        grid=(N, q_tiles),
        in_specs=in_specs,
        out_specs=out_specs,
        compiler_params=pltpu.CompilerParams(
            dimension_semantics=("parallel", "parallel"),
            vmem_limit_bytes=vmem_limit),
    )(*flats, w_taps, bias)


# ----------------------------------------------------------------------------
# Glue (layout plumbing only: pad + row-flatten; no im2col, no transposes)
# ----------------------------------------------------------------------------
def _conv3x3_same_relu(imgs, w_taps, bias, *, tq, out_dtype):
    """3x3 'same' conv + ReLU applied to the elementwise max of `imgs`
    (each (N, Cin, H, W), NCHW).  Returns (N, Cout, H, W) NCHW."""
    N, cin, H, W = imgs[0].shape
    wp = W + 2                                   # padded row stride
    q = H * wp                                   # output count (padded-width coords)
    tq = max(128, min(_round_up(tq, 128), _round_up(q, 128)))
    q_tiles = pl.cdiv(q, tq)
    qr = q_tiles * tq
    halo = _round_up(2 * wp + 2, 128)            # max tap offset, lane-padded
    lp = qr + halo

    flats = []
    for im in imgs:
        xp = jnp.pad(im, ((0, 0), (0, 0), (1, 1), (1, 1)))     # zero 'same' pad
        xf = xp.reshape(N, cin, (H + 2) * wp)
        xf = jnp.pad(xf, ((0, 0), (0, 0), (0, lp - (H + 2) * wp)))
        flats.append(xf)

    out_flat = _conv3x3_relu_flat(flats, w_taps, bias, w_pad=wp, tq=tq,
                                  q_tiles=q_tiles, out_dtype=out_dtype)
    # Drop the garbage columns produced by the padded-width coordinates.
    return out_flat[:, :, :q].reshape(N, -1, H, wp)[:, :, :, :W]


# ----------------------------------------------------------------------------
# StartTransition forward
# ----------------------------------------------------------------------------
def start_transition_forward(x_nchw, params, *, tq=512,
                             compute_dtype=jnp.bfloat16):
    """Returns [conv_id(x), conv_br(maxpool2x2(x))] in NCHW, like the module."""
    N, cin, H, W = x_nchw.shape
    if H % 2 or W % 2:
        raise ValueError(
            f"StartTransition branched path requires even H and W, got {(H, W)}")
    out_dtype = x_nchw.dtype
    xc = x_nchw.astype(compute_dtype)

    # identity branch: conv3x3 s1 p1 + ReLU
    out_id = _conv3x3_same_relu([xc], params["w_id"], params["b_id"],
                                tq=tq, out_dtype=out_dtype)

    # branched branch: maxpool2d(2) fused into conv3x3 s1 p1 + ReLU.  The 4
    # pooling phases are plain strided views; their elementwise max is taken
    # inside the kernel, so the pooled tensor never hits HBM.
    phases = [xc[:, :, a::2, b::2] for a in (0, 1) for b in (0, 1)]
    out_br = _conv3x3_same_relu(phases, params["w_br"], params["b_br"],
                                tq=tq, out_dtype=out_dtype)
    return [out_id, out_br]


# ----------------------------------------------------------------------------
# Main
# ----------------------------------------------------------------------------
if __name__ == "__main__":
    N, Cin, H, W = 2, 4, 16, 16
    SF = 8  # start_features

    key = jax.random.PRNGKey(0)
    k1, k2, k3, k4, k5 = jax.random.split(key, 5)
    x = jax.random.normal(k1, (N, Cin, H, W), jnp.float32)

    # HWIO weights (w[kh, kw, cin, cout] == torch weight[cout, cin, kh, kw]).
    w_id_hwio = jax.random.normal(k2, (3, 3, Cin, SF), jnp.float32) * 0.1
    b_id = jax.random.normal(k3, (SF,), jnp.float32) * 0.1
    w_br_hwio = jax.random.normal(k4, (3, 3, Cin, 2 * SF), jnp.float32) * 0.1
    b_br = jax.random.normal(k5, (2 * SF,), jnp.float32) * 0.1

    # Kernel-side packing: taps-major (9, Cout, Cin) in bf16, bias (Cout, 1) f32.
    params = dict(
        w_id=jnp.transpose(w_id_hwio, (0, 1, 3, 2)).reshape(9, SF, Cin).astype(jnp.bfloat16),
        b_id=b_id.reshape(SF, 1),
        w_br=jnp.transpose(w_br_hwio, (0, 1, 3, 2)).reshape(9, 2 * SF, Cin).astype(jnp.bfloat16),
        b_br=b_br.reshape(2 * SF, 1),
    )

    # tq=128 at these toy sizes; use 512-1024 at real highres resolutions
    # (roughly half that on v7x's smaller VMEM).
    fwd = jax.jit(functools.partial(start_transition_forward, tq=128))
    outs = jax.block_until_ready(fwd(x, params))

    # Pure-JAX reference (on the same bf16-rounded inputs the kernel consumes).
    x_ref = x.astype(jnp.bfloat16).astype(jnp.float32)
    w_id_ref = w_id_hwio.astype(jnp.bfloat16).astype(jnp.float32)
    w_br_ref = w_br_hwio.astype(jnp.bfloat16).astype(jnp.float32)
    xh = jnp.transpose(x_ref, (0, 2, 3, 1))
    dn = ("NHWC", "HWIO", "NHWC")
    ref_id = jax.nn.relu(
        lax.conv_general_dilated(xh, w_id_ref, (1, 1), "SAME",
                                 dimension_numbers=dn,
                                 precision=lax.Precision.HIGHEST)
        + b_id.reshape(1, 1, 1, SF)
    ).transpose(0, 3, 1, 2)
    pooled_ref = lax.reduce_window(xh, -jnp.inf, lax.max,
                                   (1, 2, 2, 1), (1, 2, 2, 1), "VALID")
    ref_br = jax.nn.relu(
        lax.conv_general_dilated(pooled_ref, w_br_ref, (1, 1), "SAME",
                                 dimension_numbers=dn,
                                 precision=lax.Precision.HIGHEST)
        + b_br.reshape(1, 1, 1, 2 * SF)
    ).transpose(0, 3, 1, 2)

    assert outs[0].shape == (N, SF, H, W)
    assert outs[1].shape == (N, 2 * SF, H // 2, W // 2)
    assert jnp.allclose(outs[0], ref_id, rtol=1e-2, atol=1e-2)
    assert jnp.allclose(outs[1], ref_br, rtol=1e-2, atol=1e-2)

    print("KERNEL_OK")
</pallas_src>

<mosaic_0001>
module attributes {stable_mosaic.version = 11 : i64} {
  func.func @kernel(%arg0: i32, %arg1: i32, %arg2: memref<1x4x256xbf16, #tpu.memory_space<vmem>>, %arg3: memref<1x4x256xbf16, #tpu.memory_space<vmem>>, %arg4: memref<1x4x256xbf16, #tpu.memory_space<vmem>>, %arg5: memref<1x4x256xbf16, #tpu.memory_space<vmem>>, %arg6: memref<9x16x4xbf16, #tpu.memory_space<vmem>>, %arg7: memref<16x1xf32, #tpu.memory_space<vmem>>, %arg8: memref<1x16x128xf32, #tpu.memory_space<vmem>>) attributes {dimension_semantics = [#tpu.dimension_semantics<parallel>, #tpu.dimension_semantics<parallel>], iteration_bounds = array<i64: 2, 1>, scalar_prefetch = 0 : i64, scratch_operands = 0 : i64, tpu.core_type = #tpu.core_type<tc>, window_params = [{transform_indices = @transform_0, window_bounds = array<i64: 1, 4, 256>}, {transform_indices = @transform_1, window_bounds = array<i64: 1, 4, 256>}, {transform_indices = @transform_2, window_bounds = array<i64: 1, 4, 256>}, {transform_indices = @transform_3, window_bounds = array<i64: 1, 4, 256>}, {pipeline_mode = #tpu.pipeline_mode<synchronous>, transform_indices = @transform_4, window_bounds = array<i64: 9, 16, 4>}, {pipeline_mode = #tpu.pipeline_mode<synchronous>, transform_indices = @transform_5, window_bounds = array<i64: 16, 1>}, {transform_indices = @transform_6, window_bounds = array<i64: 1, 16, 128>}]} {
    %c128_i32 = arith.constant 128 : i32
    %0 = arith.muli %arg1, %c128_i32 : i32
    %1 = tpu.assume_multiple %0, 128 : i32
    %c0 = arith.constant 0 : index
    %c0_0 = arith.constant 0 : index
    %2 = arith.index_cast %1 : i32 to index
    %3 = vector.load %arg2[%c0, %c0_0, %2] : memref<1x4x256xbf16, #tpu.memory_space<vmem>>, vector<1x4x256xbf16>
    %4 = vector.shape_cast %3 : vector<1x4x256xbf16> to vector<4x256xbf16>
    %c0_1 = arith.constant 0 : index
    %c0_2 = arith.constant 0 : index
    %5 = arith.index_cast %1 : i32 to index
    %6 = vector.load %arg3[%c0_1, %c0_2, %5] : memref<1x4x256xbf16, #tpu.memory_space<vmem>>, vector<1x4x256xbf16>
    %7 = vector.shape_cast %6 : vector<1x4x256xbf16> to vector<4x256xbf16>
    %8 = arith.maximumf %4, %7 : vector<4x256xbf16>
    %c0_3 = arith.constant 0 : index
    %c0_4 = arith.constant 0 : index
    %9 = arith.index_cast %1 : i32 to index
    %10 = vector.load %arg4[%c0_3, %c0_4, %9] : memref<1x4x256xbf16, #tpu.memory_space<vmem>>, vector<1x4x256xbf16>
    %11 = vector.shape_cast %10 : vector<1x4x256xbf16> to vector<4x256xbf16>
    %12 = arith.maximumf %8, %11 : vector<4x256xbf16>
    %c0_5 = arith.constant 0 : index
    %c0_6 = arith.constant 0 : index
    %13 = arith.index_cast %1 : i32 to index
    %14 = vector.load %arg5[%c0_5, %c0_6, %13] : memref<1x4x256xbf16, #tpu.memory_space<vmem>>, vector<1x4x256xbf16>
    %15 = vector.shape_cast %14 : vector<1x4x256xbf16> to vector<4x256xbf16>
    %16 = arith.maximumf %12, %15 : vector<4x256xbf16>
    %c0_7 = arith.constant 0 : index
    %c0_8 = arith.constant 0 : index
    %17 = vector.load %arg7[%c0_7, %c0_8] : memref<16x1xf32, #tpu.memory_space<vmem>>, vector<16x1xf32>
    %18 = vector.shape_cast %17 : vector<16x1xf32> to vector<16x1xf32>
    %19 = vector.broadcast %18 : vector<16x1xf32> to vector<16x128xf32>
    %20 = vector.extract_strided_slice %16 {offsets = [0, 0], sizes = [4, 128], strides = [1, 1]} : vector<4x256xbf16> to vector<4x128xbf16>
    %c0_9 = arith.constant 0 : index
    %c0_10 = arith.constant 0 : index
    %c0_11 = arith.constant 0 : index
    %21 = vector.load %arg6[%c0_9, %c0_10, %c0_11] : memref<9x16x4xbf16, #tpu.memory_space<vmem>>, vector<1x16x4xbf16>
    %22 = vector.shape_cast %21 : vector<1x16x4xbf16> to vector<16x4xbf16>
    %cst = arith.constant dense<0.000000e+00> : vector<16x128xf32>
    %23 = tpu.matmul %22, %20, %cst {dimension_numbers = #tpu.dot_dimension_numbers<[1], [0], [0], [1], [0, 0, 1, 1], [], []>} : vector<16x4xbf16>, vector<4x128xbf16>, vector<16x128xf32> -> vector<16x128xf32>
    %24 = arith.addf %19, %23 : vector<16x128xf32>
    %25 = vector.extract_strided_slice %16 {offsets = [0, 1], sizes = [4, 128], strides = [1, 1]} : vector<4x256xbf16> to vector<4x128xbf16>
    %c1 = arith.constant 1 : index
    %c0_12 = arith.constant 0 : index
    %c0_13 = arith.constant 0 : index
    %26 = vector.load %arg6[%c1, %c0_12, %c0_13] : memref<9x16x4xbf16, #tpu.memory_space<vmem>>, vector<1x16x4xbf16>
    %27 = vector.shape_cast %26 : vector<1x16x4xbf16> to vector<16x4xbf16>
    %cst_14 = arith.constant dense<0.000000e+00> : vector<16x128xf32>
    %28 = tpu.matmul %27, %25, %cst_14 {dimension_numbers = #tpu.dot_dimension_numbers<[1], [0], [0], [1], [0, 0, 1, 1], [], []>} : vector<16x4xbf16>, vector<4x128xbf16>, vector<16x128xf32> -> vector<16x128xf32>
    %29 = arith.addf %24, %28 : vector<16x128xf32>
    %30 = vector.extract_strided_slice %16 {offsets = [0, 2], sizes = [4, 128], strides = [1, 1]} : vector<4x256xbf16> to vector<4x128xbf16>
    %c2 = arith.constant 2 : index
    %c0_15 = arith.constant 0 : index
    %c0_16 = arith.constant 0 : index
    %31 = vector.load %arg6[%c2, %c0_15, %c0_16] : memref<9x16x4xbf16, #tpu.memory_space<vmem>>, vector<1x16x4xbf16>
    %32 = vector.shape_cast %31 : vector<1x16x4xbf16> to vector<16x4xbf16>
    %cst_17 = arith.constant dense<0.000000e+00> : vector<16x128xf32>
    %33 = tpu.matmul %32, %30, %cst_17 {dimension_numbers = #tpu.dot_dimension_numbers<[1], [0], [0], [1], [0, 0, 1, 1], [], []>} : vector<16x4xbf16>, vector<4x128xbf16>, vector<16x128xf32> -> vector<16x128xf32>
    %34 = arith.addf %29, %33 : vector<16x128xf32>
    %35 = vector.extract_strided_slice %16 {offsets = [0, 10], sizes = [4, 128], strides = [1, 1]} : vector<4x256xbf16> to vector<4x128xbf16>
    %c3 = arith.constant 3 : index
    %c0_18 = arith.constant 0 : index
    %c0_19 = arith.constant 0 : index
    %36 = vector.load %arg6[%c3, %c0_18, %c0_19] : memref<9x16x4xbf16, #tpu.memory_space<vmem>>, vector<1x16x4xbf16>
    %37 = vector.shape_cast %36 : vector<1x16x4xbf16> to vector<16x4xbf16>
    %cst_20 = arith.constant dense<0.000000e+00> : vector<16x128xf32>
    %38 = tpu.matmul %37, %35, %cst_20 {dimension_numbers = #tpu.dot_dimension_numbers<[1], [0], [0], [1], [0, 0, 1, 1], [], []>} : vector<16x4xbf16>, vector<4x128xbf16>, vector<16x128xf32> -> vector<16x128xf32>
    %39 = arith.addf %34, %38 : vector<16x128xf32>
    %40 = vector.extract_strided_slice %16 {offsets = [0, 11], sizes = [4, 128], strides = [1, 1]} : vector<4x256xbf16> to vector<4x128xbf16>
    %c4 = arith.constant 4 : index
    %c0_21 = arith.constant 0 : index
    %c0_22 = arith.constant 0 : index
    %41 = vector.load %arg6[%c4, %c0_21, %c0_22] : memref<9x16x4xbf16, #tpu.memory_space<vmem>>, vector<1x16x4xbf16>
    %42 = vector.shape_cast %41 : vector<1x16x4xbf16> to vector<16x4xbf16>
    %cst_23 = arith.constant dense<0.000000e+00> : vector<16x128xf32>
    %43 = tpu.matmul %42, %40, %cst_23 {dimension_numbers = #tpu.dot_dimension_numbers<[1], [0], [0], [1], [0, 0, 1, 1], [], []>} : vector<16x4xbf16>, vector<4x128xbf16>, vector<16x128xf32> -> vector<16x128xf32>
    %44 = arith.addf %39, %43 : vector<16x128xf32>
    %45 = vector.extract_strided_slice %16 {offsets = [0, 12], sizes = [4, 128], strides = [1, 1]} : vector<4x256xbf16> to vector<4x128xbf16>
    %c5 = arith.constant 5 : index
    %c0_24 = arith.constant 0 : index
    %c0_25 = arith.constant 0 : index
    %46 = vector.load %arg6[%c5, %c0_24, %c0_25] : memref<9x16x4xbf16, #tpu.memory_space<vmem>>, vector<1x16x4xbf16>
    %47 = vector.shape_cast %46 : vector<1x16x4xbf16> to vector<16x4xbf16>
    %cst_26 = arith.constant dense<0.000000e+00> : vector<16x128xf32>
    %48 = tpu.matmul %47, %45, %cst_26 {dimension_numbers = #tpu.dot_dimension_numbers<[1], [0], [0], [1], [0, 0, 1, 1], [], []>} : vector<16x4xbf16>, vector<4x128xbf16>, vector<16x128xf32> -> vector<16x128xf32>
    %49 = arith.addf %44, %48 : vector<16x128xf32>
    %50 = vector.extract_strided_slice %16 {offsets = [0, 20], sizes = [4, 128], strides = [1, 1]} : vector<4x256xbf16> to vector<4x128xbf16>
    %c6 = arith.constant 6 : index
    %c0_27 = arith.constant 0 : index
    %c0_28 = arith.constant 0 : index
    %51 = vector.load %arg6[%c6, %c0_27, %c0_28] : memref<9x16x4xbf16, #tpu.memory_space<vmem>>, vector<1x16x4xbf16>
    %52 = vector.shape_cast %51 : vector<1x16x4xbf16> to vector<16x4xbf16>
    %cst_29 = arith.constant dense<0.000000e+00> : vector<16x128xf32>
    %53 = tpu.matmul %52, %50, %cst_29 {dimension_numbers = #tpu.dot_dimension_numbers<[1], [0], [0], [1], [0, 0, 1, 1], [], []>} : vector<16x4xbf16>, vector<4x128xbf16>, vector<16x128xf32> -> vector<16x128xf32>
    %54 = arith.addf %49, %53 : vector<16x128xf32>
    %55 = vector.extract_strided_slice %16 {offsets = [0, 21], sizes = [4, 128], strides = [1, 1]} : vector<4x256xbf16> to vector<4x128xbf16>
    %c7 = arith.constant 7 : index
    %c0_30 = arith.constant 0 : index
    %c0_31 = arith.constant 0 : index
    %56 = vector.load %arg6[%c7, %c0_30, %c0_31] : memref<9x16x4xbf16, #tpu.memory_space<vmem>>, vector<1x16x4xbf16>
    %57 = vector.shape_cast %56 : vector<1x16x4xbf16> to vector<16x4xbf16>
    %cst_32 = arith.constant dense<0.000000e+00> : vector<16x128xf32>
    %58 = tpu.matmul %57, %55, %cst_32 {dimension_numbers = #tpu.dot_dimension_numbers<[1], [0], [0], [1], [0, 0, 1, 1], [], []>} : vector<16x4xbf16>, vector<4x128xbf16>, vector<16x128xf32> -> vector<16x128xf32>
    %59 = arith.addf %54, %58 : vector<16x128xf32>
    %60 = vector.extract_strided_slice %16 {offsets = [0, 22], sizes = [4, 128], strides = [1, 1]} : vector<4x256xbf16> to vector<4x128xbf16>
    %c8 = arith.constant 8 : index
    %c0_33 = arith.constant 0 : index
    %c0_34 = arith.constant 0 : index
    %61 = vector.load %arg6[%c8, %c0_33, %c0_34] : memref<9x16x4xbf16, #tpu.memory_space<vmem>>, vector<1x16x4xbf16>
    %62 = vector.shape_cast %61 : vector<1x16x4xbf16> to vector<16x4xbf16>
    %cst_35 = arith.constant dense<0.000000e+00> : vector<16x128xf32>
    %63 = tpu.matmul %62, %60, %cst_35 {dimension_numbers = #tpu.dot_dimension_numbers<[1], [0], [0], [1], [0, 0, 1, 1], [], []>} : vector<16x4xbf16>, vector<4x128xbf16>, vector<16x128xf32> -> vector<16x128xf32>
    %64 = arith.addf %59, %63 : vector<16x128xf32>
    %cst_36 = arith.constant 0.000000e+00 : f32
    %65 = vector.broadcast %cst_36 : f32 to vector<16x128xf32>
    %66 = arith.maximumf %64, %65 : vector<16x128xf32>
    %c0_37 = arith.constant 0 : index
    %c0_38 = arith.constant 0 : index
    %c0_39 = arith.constant 0 : index
    %67 = vector.load %arg8[%c0_37, %c0_38, %c0_39] : memref<1x16x128xf32, #tpu.memory_space<vmem>>, vector<1x16x128xf32>
    %68 = vector.shape_cast %67 : vector<1x16x128xf32> to vector<16x128xf32>
    %69 = vector.shape_cast %66 : vector<16x128xf32> to vector<1x16x128xf32>
    tpu.vector_store %arg8[%c0_37, %c0_38, %c0_39], %69 {strides = array<i32>} : memref<1x16x128xf32, #tpu.memory_space<vmem>>, vector<1x16x128xf32>,
    return
  }
  func.func @transform_0(%arg0: i32, %arg1: i32) -> (i32, i32, i32) {
    %c0_i32 = arith.constant 0 : i32
    %c0_i32_0 = arith.constant 0 : i32
    %c0_i32_1 = arith.constant 0 : i32
    return %arg0, %c0_i32, %c0_i32_0 : i32, i32, i32
  }
  func.func @transform_1(%arg0: i32, %arg1: i32) -> (i32, i32, i32) {
    %c0_i32 = arith.constant 0 : i32
    %c0_i32_0 = arith.constant 0 : i32
    %c0_i32_1 = arith.constant 0 : i32
    return %arg0, %c0_i32, %c0_i32_0 : i32, i32, i32
  }
  func.func @transform_2(%arg0: i32, %arg1: i32) -> (i32, i32, i32) {
    %c0_i32 = arith.constant 0 : i32
    %c0_i32_0 = arith.constant 0 : i32
    %c0_i32_1 = arith.constant 0 : i32
    return %arg0, %c0_i32, %c0_i32_0 : i32, i32, i32
  }
  func.func @transform_3(%arg0: i32, %arg1: i32) -> (i32, i32, i32) {
    %c0_i32 = arith.constant 0 : i32
    %c0_i32_0 = arith.constant 0 : i32
    %c0_i32_1 = arith.constant 0 : i32
    return %arg0, %c0_i32, %c0_i32_0 : i32, i32, i32
  }
  func.func @transform_4(%arg0: i32, %arg1: i32) -> (i32, i32, i32) {
    %c0_i32 = arith.constant 0 : i32
    %c0_i32_0 = arith.constant 0 : i32
    %c0_i32_1 = arith.constant 0 : i32
    %c0_i32_2 = arith.constant 0 : i32
    return %c0_i32, %c0_i32_0, %c0_i32_1 : i32, i32, i32
  }
  func.func @transform_5(%arg0: i32, %arg1: i32) -> (i32, i32) {
    %c0_i32 = arith.constant 0 : i32
    %c0_i32_0 = arith.constant 0 : i32
    %c0_i32_1 = arith.constant 0 : i32
    return %c0_i32, %c0_i32_0 : i32, i32
  }
  func.func @transform_6(%arg0: i32, %arg1: i32) -> (i32, i32, i32) {
    %c0_i32 = arith.constant 0 : i32
    %c0_i32_0 = arith.constant 0 : i32
    return %arg0, %c0_i32, %arg1 : i32, i32, i32
  }
}

module attributes {stable_mosaic.version = 11 : i64} {
  func.func @kernel(%arg0: i32, %arg1: i32, %arg2: memref<1x4x512xbf16, #tpu.memory_space<vmem>>, %arg3: memref<9x8x4xbf16, #tpu.memory_space<vmem>>, %arg4: memref<8x1xf32, #tpu.memory_space<vmem>>, %arg5: memref<1x8x128xf32, #tpu.memory_space<vmem>>) attributes {dimension_semantics = [#tpu.dimension_semantics<parallel>, #tpu.dimension_semantics<parallel>], iteration_bounds = array<i64: 2, 3>, scalar_prefetch = 0 : i64, scratch_operands = 0 : i64, tpu.core_type = #tpu.core_type<tc>, window_params = [{transform_indices = @transform_0, window_bounds = array<i64: 1, 4, 512>}, {pipeline_mode = #tpu.pipeline_mode<synchronous>, transform_indices = @transform_1, window_bounds = array<i64: 9, 8, 4>}, {pipeline_mode = #tpu.pipeline_mode<synchronous>, transform_indices = @transform_2, window_bounds = array<i64: 8, 1>}, {transform_indices = @transform_3, window_bounds = array<i64: 1, 8, 128>}]} {
    %c128_i32 = arith.constant 128 : i32
    %0 = arith.muli %arg1, %c128_i32 : i32
    %1 = tpu.assume_multiple %0, 128 : i32
    %c0 = arith.constant 0 : index
    %c0_0 = arith.constant 0 : index
    %2 = arith.index_cast %1 : i32 to index
    %3 = vector.load %arg2[%c0, %c0_0, %2] : memref<1x4x512xbf16, #tpu.memory_space<vmem>>, vector<1x4x256xbf16>
    %4 = vector.shape_cast %3 : vector<1x4x256xbf16> to vector<4x256xbf16>
    %c0_1 = arith.constant 0 : index
    %c0_2 = arith.constant 0 : index
    %5 = vector.load %arg4[%c0_1, %c0_2] : memref<8x1xf32, #tpu.memory_space<vmem>>, vector<8x1xf32>
    %6 = vector.shape_cast %5 : vector<8x1xf32> to vector<8x1xf32>
    %7 = vector.broadcast %6 : vector<8x1xf32> to vector<8x128xf32>
    %8 = vector.extract_strided_slice %4 {offsets = [0, 0], sizes = [4, 128], strides = [1, 1]} : vector<4x256xbf16> to vector<4x128xbf16>
    %c0_3 = arith.constant 0 : index
    %c0_4 = arith.constant 0 : index
    %c0_5 = arith.constant 0 : index
    %9 = vector.load %arg3[%c0_3, %c0_4, %c0_5] : memref<9x8x4xbf16, #tpu.memory_space<vmem>>, vector<1x8x4xbf16>
    %10 = vector.shape_cast %9 : vector<1x8x4xbf16> to vector<8x4xbf16>
    %cst = arith.constant dense<0.000000e+00> : vector<8x128xf32>
    %11 = tpu.matmul %10, %8, %cst {dimension_numbers = #tpu.dot_dimension_numbers<[1], [0], [0], [1], [0, 0, 1, 1], [], []>} : vector<8x4xbf16>, vector<4x128xbf16>, vector<8x128xf32> -> vector<8x128xf32>
    %12 = arith.addf %7, %11 : vector<8x128xf32>
    %13 = vector.extract_strided_slice %4 {offsets = [0, 1], sizes = [4, 128], strides = [1, 1]} : vector<4x256xbf16> to vector<4x128xbf16>
    %c1 = arith.constant 1 : index
    %c0_6 = arith.constant 0 : index
    %c0_7 = arith.constant 0 : index
    %14 = vector.load %arg3[%c1, %c0_6, %c0_7] : memref<9x8x4xbf16, #tpu.memory_space<vmem>>, vector<1x8x4xbf16>
    %15 = vector.shape_cast %14 : vector<1x8x4xbf16> to vector<8x4xbf16>
    %cst_8 = arith.constant dense<0.000000e+00> : vector<8x128xf32>
    %16 = tpu.matmul %15, %13, %cst_8 {dimension_numbers = #tpu.dot_dimension_numbers<[1], [0], [0], [1], [0, 0, 1, 1], [], []>} : vector<8x4xbf16>, vector<4x128xbf16>, vector<8x128xf32> -> vector<8x128xf32>
    %17 = arith.addf %12, %16 : vector<8x128xf32>
    %18 = vector.extract_strided_slice %4 {offsets = [0, 2], sizes = [4, 128], strides = [1, 1]} : vector<4x256xbf16> to vector<4x128xbf16>
    %c2 = arith.constant 2 : index
    %c0_9 = arith.constant 0 : index
    %c0_10 = arith.constant 0 : index
    %19 = vector.load %arg3[%c2, %c0_9, %c0_10] : memref<9x8x4xbf16, #tpu.memory_space<vmem>>, vector<1x8x4xbf16>
    %20 = vector.shape_cast %19 : vector<1x8x4xbf16> to vector<8x4xbf16>
    %cst_11 = arith.constant dense<0.000000e+00> : vector<8x128xf32>
    %21 = tpu.matmul %20, %18, %cst_11 {dimension_numbers = #tpu.dot_dimension_numbers<[1], [0], [0], [1], [0, 0, 1, 1], [], []>} : vector<8x4xbf16>, vector<4x128xbf16>, vector<8x128xf32> -> vector<8x128xf32>
    %22 = arith.addf %17, %21 : vector<8x128xf32>
    %23 = vector.extract_strided_slice %4 {offsets = [0, 18], sizes = [4, 128], strides = [1, 1]} : vector<4x256xbf16> to vector<4x128xbf16>
    %c3 = arith.constant 3 : index
    %c0_12 = arith.constant 0 : index
    %c0_13 = arith.constant 0 : index
    %24 = vector.load %arg3[%c3, %c0_12, %c0_13] : memref<9x8x4xbf16, #tpu.memory_space<vmem>>, vector<1x8x4xbf16>
    %25 = vector.shape_cast %24 : vector<1x8x4xbf16> to vector<8x4xbf16>
    %cst_14 = arith.constant dense<0.000000e+00> : vector<8x128xf32>
    %26 = tpu.matmul %25, %23, %cst_14 {dimension_numbers = #tpu.dot_dimension_numbers<[1], [0], [0], [1], [0, 0, 1, 1], [], []>} : vector<8x4xbf16>, vector<4x128xbf16>, vector<8x128xf32> -> vector<8x128xf32>
    %27 = arith.addf %22, %26 : vector<8x128xf32>
    %28 = vector.extract_strided_slice %4 {offsets = [0, 19], sizes = [4, 128], strides = [1, 1]} : vector<4x256xbf16> to vector<4x128xbf16>
    %c4 = arith.constant 4 : index
    %c0_15 = arith.constant 0 : index
    %c0_16 = arith.constant 0 : index
    %29 = vector.load %arg3[%c4, %c0_15, %c0_16] : memref<9x8x4xbf16, #tpu.memory_space<vmem>>, vector<1x8x4xbf16>
    %30 = vector.shape_cast %29 : vector<1x8x4xbf16> to vector<8x4xbf16>
    %cst_17 = arith.constant dense<0.000000e+00> : vector<8x128xf32>
    %31 = tpu.matmul %30, %28, %cst_17 {dimension_numbers = #tpu.dot_dimension_numbers<[1], [0], [0], [1], [0, 0, 1, 1], [], []>} : vector<8x4xbf16>, vector<4x128xbf16>, vector<8x128xf32> -> vector<8x128xf32>
    %32 = arith.addf %27, %31 : vector<8x128xf32>
    %33 = vector.extract_strided_slice %4 {offsets = [0, 20], sizes = [4, 128], strides = [1, 1]} : vector<4x256xbf16> to vector<4x128xbf16>
    %c5 = arith.constant 5 : index
    %c0_18 = arith.constant 0 : index
    %c0_19 = arith.constant 0 : index
    %34 = vector.load %arg3[%c5, %c0_18, %c0_19] : memref<9x8x4xbf16, #tpu.memory_space<vmem>>, vector<1x8x4xbf16>
    %35 = vector.shape_cast %34 : vector<1x8x4xbf16> to vector<8x4xbf16>
    %cst_20 = arith.constant dense<0.000000e+00> : vector<8x128xf32>
    %36 = tpu.matmul %35, %33, %cst_20 {dimension_numbers = #tpu.dot_dimension_numbers<[1], [0], [0], [1], [0, 0, 1, 1], [], []>} : vector<8x4xbf16>, vector<4x128xbf16>, vector<8x128xf32> -> vector<8x128xf32>
    %37 = arith.addf %32, %36 : vector<8x128xf32>
    %38 = vector.extract_strided_slice %4 {offsets = [0, 36], sizes = [4, 128], strides = [1, 1]} : vector<4x256xbf16> to vector<4x128xbf16>
    %c6 = arith.constant 6 : index
    %c0_21 = arith.constant 0 : index
    %c0_22 = arith.constant 0 : index
    %39 = vector.load %arg3[%c6, %c0_21, %c0_22] : memref<9x8x4xbf16, #tpu.memory_space<vmem>>, vector<1x8x4xbf16>
    %40 = vector.shape_cast %39 : vector<1x8x4xbf16> to vector<8x4xbf16>
    %cst_23 = arith.constant dense<0.000000e+00> : vector<8x128xf32>
    %41 = tpu.matmul %40, %38, %cst_23 {dimension_numbers = #tpu.dot_dimension_numbers<[1], [0], [0], [1], [0, 0, 1, 1], [], []>} : vector<8x4xbf16>, vector<4x128xbf16>, vector<8x128xf32> -> vector<8x128xf32>
    %42 = arith.addf %37, %41 : vector<8x128xf32>
    %43 = vector.extract_strided_slice %4 {offsets = [0, 37], sizes = [4, 128], strides = [1, 1]} : vector<4x256xbf16> to vector<4x128xbf16>
    %c7 = arith.constant 7 : index
    %c0_24 = arith.constant 0 : index
    %c0_25 = arith.constant 0 : index
    %44 = vector.load %arg3[%c7, %c0_24, %c0_25] : memref<9x8x4xbf16, #tpu.memory_space<vmem>>, vector<1x8x4xbf16>
    %45 = vector.shape_cast %44 : vector<1x8x4xbf16> to vector<8x4xbf16>
    %cst_26 = arith.constant dense<0.000000e+00> : vector<8x128xf32>
    %46 = tpu.matmul %45, %43, %cst_26 {dimension_numbers = #tpu.dot_dimension_numbers<[1], [0], [0], [1], [0, 0, 1, 1], [], []>} : vector<8x4xbf16>, vector<4x128xbf16>, vector<8x128xf32> -> vector<8x128xf32>
    %47 = arith.addf %42, %46 : vector<8x128xf32>
    %48 = vector.extract_strided_slice %4 {offsets = [0, 38], sizes = [4, 128], strides = [1, 1]} : vector<4x256xbf16> to vector<4x128xbf16>
    %c8 = arith.constant 8 : index
    %c0_27 = arith.constant 0 : index
    %c0_28 = arith.constant 0 : index
    %49 = vector.load %arg3[%c8, %c0_27, %c0_28] : memref<9x8x4xbf16, #tpu.memory_space<vmem>>, vector<1x8x4xbf16>
    %50 = vector.shape_cast %49 : vector<1x8x4xbf16> to vector<8x4xbf16>
    %cst_29 = arith.constant dense<0.000000e+00> : vector<8x128xf32>
    %51 = tpu.matmul %50, %48, %cst_29 {dimension_numbers = #tpu.dot_dimension_numbers<[1], [0], [0], [1], [0, 0, 1, 1], [], []>} : vector<8x4xbf16>, vector<4x128xbf16>, vector<8x128xf32> -> vector<8x128xf32>
    %52 = arith.addf %47, %51 : vector<8x128xf32>
    %cst_30 = arith.constant 0.000000e+00 : f32
    %53 = vector.broadcast %cst_30 : f32 to vector<8x128xf32>
    %54 = arith.maximumf %52, %53 : vector<8x128xf32>
    %c0_31 = arith.constant 0 : index
    %c0_32 = arith.constant 0 : index
    %c0_33 = arith.constant 0 : index
    %55 = vector.load %arg5[%c0_31, %c0_32, %c0_33] : memref<1x8x128xf32, #tpu.memory_space<vmem>>, vector<1x8x128xf32>
    %56 = vector.shape_cast %55 : vector<1x8x128xf32> to vector<8x128xf32>
    %57 = vector.shape_cast %54 : vector<8x128xf32> to vector<1x8x128xf32>
    tpu.vector_store %arg5[%c0_31, %c0_32, %c0_33], %57 {strides = array<i32>} : memref<1x8x128xf32, #tpu.memory_space<vmem>>, vector<1x8x128xf32>,
    return
  }
  func.func @transform_0(%arg0: i32, %arg1: i32) -> (i32, i32, i32) {
    %c0_i32 = arith.constant 0 : i32
    %c0_i32_0 = arith.constant 0 : i32
    %c0_i32_1 = arith.constant 0 : i32
    return %arg0, %c0_i32, %c0_i32_0 : i32, i32, i32
  }
  func.func @transform_1(%arg0: i32, %arg1: i32) -> (i32, i32, i32) {
    %c0_i32 = arith.constant 0 : i32
    %c0_i32_0 = arith.constant 0 : i32
    %c0_i32_1 = arith.constant 0 : i32
    %c0_i32_2 = arith.constant 0 : i32
    return %c0_i32, %c0_i32_0, %c0_i32_1 : i32, i32, i32
  }
  func.func @transform_2(%arg0: i32, %arg1: i32) -> (i32, i32) {
    %c0_i32 = arith.constant 0 : i32
    %c0_i32_0 = arith.constant 0 : i32
    %c0_i32_1 = arith.constant 0 : i32
    return %c0_i32, %c0_i32_0 : i32, i32
  }
  func.func @transform_3(%arg0: i32, %arg1: i32) -> (i32, i32, i32) {
    %c0_i32 = arith.constant 0 : i32
    %c0_i32_0 = arith.constant 0 : i32
    return %arg0, %c0_i32, %arg1 : i32, i32, i32
  }
}

</mosaic_0001>

<llo_original>
// kernel: start_transition_forward.2
$region0: #{start_transition_forward.2}
  #allocation0 [shape = 'u32[]', space=smem, size = 0x4, offset = 0x4, fixed_abs, tag = 'smem constant byte address 0x4 - core index']
  #allocation1 [shape = 'u32[144,128]{1,0:T(1,128)}', space=vmem, size = 0x12000, scoped, tag = 'internal scratch']
  %s0 = inlined_call_operand.vmem [shape: bf16[2,4,512], index: 0, kind: input, shape index: {}]
  %s1 = inlined_call_operand.vmem [shape: bf16[9,8,4], index: 1, kind: input, shape index: {}]
  %s2 = inlined_call_operand.vmem [shape: f32[8,1], index: 2, kind: input, shape index: {}]
  %s3 = inlined_call_operand.vmem [shape: f32[2,8,384], index: 3, kind: output, shape index: {}]
  %s4 = sld [smem:[#allocation0]]
  $region45: #{start_transition_forward.2} parent=0
    _
  %s6 = ssub.s32 1, %s4
  %s7 = scalar_select 0, %s6, %s4
  loop: start=0, step=1, limit=8
  $region2: #{start_transition_forward.2} parent=0 // loop_pre_header
    _
  $region3: #{start_transition_forward.2} parent=0 // loop_header
    %s9 = sphi 0, %s13
    %p10 = scmp.ge.s32.totalorder %s9, 8
    %s16 = sphi 0, %s28
    %s17 = sphi 0, %s24
    %s18 = sphi 0, %s16
    %s19 = sphi 0, %s17
    %s20 = sphi 0, %s18
    %s21 = sphi 0, %s19
    %s31 = sphi 0, %s33
    %s34 = sphi 0, %s31
    %s35 = sphi 0, %s34
    %s51 = sphi 0, %s35
    %s55 = sphi 0, %s55
    %s57 = sphi 0, %s55
    %s58 = sphi 0, %s57
    %s72 = sphi 0, %s58
    %s76 = sphi 0, %s76
    %s78 = sphi 0, %s76
    %s79 = sphi 0, %s78
    %s93 = sphi 0, %s79
    %s101 = sphi 0, %s103
    %s104 = sphi 0, %s101
    %s105 = sphi 0, %s104
    %s121 = sphi 0, %s105
  $region4: #{start_transition_forward.2} parent=0 // loop_header_branch
    %12 = sbr.rel (%p10) target = $region8
  $region5: #{start_transition_forward.2} parent=0 // loop_body
    %s14 = ssub.s32 %s9, 1
    %s15 = ssub.s32 %s9, 2
    %s22 = sadd.s32 1, %s17
    %p23 = scmp.ge.s32.totalorder %s22, 3
    %s24 = scalar_select %p23, 0, %s22
    %s25 = sadd.s32 1, %s16
    %s26 = scalar_select %p23, %s25, %s16
    %p27 = scmp.ge.s32.totalorder %s26, 2
    %s28 = scalar_select %p27, 0, %s26
    %s29 = ssub.s32 %s16, %s28
    %p30 = scmp.eq.s32.totalorder %s29, 0
    %s32 = sadd.s32 %s31, 1
    %s33 = scalar_select %p30, %s31, %s32
    %p36 = pneg %p30
    %p37 = scmp.eq.s32.totalorder %s9, 5
    %p38 = por %p36, %p37
    %p39 = scmp.ne.s32.totalorder %s31, %s34
    %p40 = scmp.eq.s32.totalorder %s9, 0
    %p41 = por %p39, %p40
    %p42 = scmp.ne.s32.totalorder %s31, %s34
    %p43 = scmp.eq.s32.totalorder %s14, 5
    %p44 = por %p42, %p43
    %p45 = scmp.ne.s32.totalorder %s34, %s35
    %p46 = scmp.eq.s32.totalorder %s14, 0
    %p47 = por %p45, %p46
    %p48 = scmp.ne.s32.totalorder %s34, %s35
    %p49 = scmp.eq.s32.totalorder %s15, 5
    %p50 = por %p48, %p49
    %p52 = scmp.ne.s32.totalorder %s35, %s51
    %p53 = scmp.eq.s32.totalorder %s15, 0
    %p54 = por %p52, %p53
    %s56 = sadd.s32 %s55, 1
    %p59 = scmp.eq.s32.totalorder %s9, 5
    %p60 = scmp.ne.s32.totalorder %s55, %s57
    %p61 = scmp.eq.s32.totalorder %s9, 0
    %p62 = por %p60, %p61
    %p63 = scmp.ne.s32.totalorder %s55, %s57
    %p64 = scmp.eq.s32.totalorder %s14, 5
    %p65 = por %p63, %p64
    %p66 = scmp.ne.s32.totalorder %s57, %s58
    %p67 = scmp.eq.s32.totalorder %s14, 0
    %p68 = por %p66, %p67
    %p69 = scmp.ne.s32.totalorder %s57, %s58
    %p70 = scmp.eq.s32.totalorder %s15, 5
    %p71 = por %p69, %p70
    %p73 = scmp.ne.s32.totalorder %s58, %s72
    %p74 = scmp.eq.s32.totalorder %s15, 0
    %p75 = por %p73, %p74
    %s77 = sadd.s32 %s76, 1
    %p80 = scmp.eq.s32.totalorder %s9, 5
    %p81 = scmp.ne.s32.totalorder %s76, %s78
    %p82 = scmp.eq.s32.totalorder %s9, 0
    %p83 = por %p81, %p82
    %p84 = scmp.ne.s32.totalorder %s76, %s78
    %p85 = scmp.eq.s32.totalorder %s14, 5
    %p86 = por %p84, %p85
    %p87 = scmp.ne.s32.totalorder %s78, %s79
    %p88 = scmp.eq.s32.totalorder %s14, 0
    %p89 = por %p87, %p88
    %p90 = scmp.ne.s32.totalorder %s78, %s79
    %p91 = scmp.eq.s32.totalorder %s15, 5
    %p92 = por %p90, %p91
    %p94 = scmp.ne.s32.totalorder %s79, %s93
    %p95 = scmp.eq.s32.totalorder %s15, 0
    %p96 = por %p94, %p95
    %s97 = ssub.s32 %s16, %s28
    %s98 = ssub.s32 %s17, %s24
    %s99 = sor.u32 %s97, %s98
    %p100 = scmp.eq.s32.totalorder %s99, 0
    %s102 = sadd.s32 %s101, 1
    %s103 = scalar_select %p100, %s101, %s102
    %p106 = pneg %p100
    %p107 = scmp.eq.s32.totalorder %s9, 5
    %p108 = por %p106, %p107
    %p109 = scmp.ne.s32.totalorder %s101, %s104
    %p110 = scmp.eq.s32.totalorder %s9, 0
    %p111 = por %p109, %p110
    %p112 = scmp.ne.s32.totalorder %s101, %s104
    %p113 = scmp.eq.s32.totalorder %s14, 5
    %p114 = por %p112, %p113
    %p115 = scmp.ne.s32.totalorder %s104, %s105
    %p116 = scmp.eq.s32.totalorder %s14, 0
    %p117 = por %p115, %p116
    %p118 = scmp.ne.s32.totalorder %s104, %s105
    %p119 = scmp.eq.s32.totalorder %s15, 5
    %p120 = por %p118, %p119
    %p122 = scmp.ne.s32.totalorder %s105, %s121
    %p123 = scmp.eq.s32.totalorder %s15, 0
    %p124 = por %p122, %p123
    %p125 = scmp.le.s32.totalorder 1, %s9
    %p126 = scmp.lt.s32.totalorder %s9, 7
    %p127 = pnand %p125, %p126
    %p128 = pneg %p127
    // Predicated region
    $region9: #{start_transition_forward.2} parent=5 // pred_check
      _
    $region10: #{start_transition_forward.2} parent=5 // pred_check_branch
      %130 = sbr.rel (%p127) target = $region12
    $region11: #{start_transition_forward.2} parent=5 // pred_region
      %s131 = ssub.s32 %s9, 1
      // Predicated region
      $region13: #{start_transition_forward.2} parent=11 // pred_check
        %p132 = pneg %p68
      $region14: #{start_transition_forward.2} parent=11 // pred_check_branch
        %134 = sbr.rel (%p132) target = $region16
      $region15: #{start_transition_forward.2} parent=11 // pred_region
        _
      $region16: #{start_transition_forward.2} parent=11 // pred_fallthru
        _
      // Predicated region
      $region17: #{start_transition_forward.2} parent=11 // pred_check
        %p135 = pneg %p89
      $region18: #{start_transition_forward.2} parent=11 // pred_check_branch
        %137 = sbr.rel (%p135) target = $region20
      $region19: #{start_transition_forward.2} parent=11 // pred_region
        _
      $region20: #{start_transition_forward.2} parent=11 // pred_fallthru
        _
    $region12: #{start_transition_forward.2} parent=5 // pred_fallthru
      _
    %p138 = scmp.lt.s32.totalorder %s9, 6
    // Predicated region
    $region21: #{start_transition_forward.2} parent=5 // pred_check
      %p139 = pneg %p138
    $region22: #{start_transition_forward.2} parent=5 // pred_check_branch
      %141 = sbr.rel (%p139) target = $region24
    $region23: #{start_transition_forward.2} parent=5 // pred_region
      // Predicated region
      $region25: #{start_transition_forward.2} parent=23 // pred_check
        %p142 = pneg %p41
      $region26: #{start_transition_forward.2} parent=23 // pred_check_branch
        %144 = sbr.rel (%p142) target = $region28
      $region27: #{start_transition_forward.2} parent=23 // pred_region
        %p145 = scmp.lt.s32.totalorder %s16, 1
        %s146 = scalar_select %p145, %s16, 1
        %s147 = smul.addr %s146, 4
        %s148 = smul.addr %s147, 2
        %s149 = scalar_lea.vmem %s0, %s148
      $region28: #{start_transition_forward.2} parent=23 // pred_fallthru
        _
    $region24: #{start_transition_forward.2} parent=5 // pred_fallthru
      _
    %p150 = scmp.le.s32.totalorder 1, %s9
    %p151 = scmp.lt.s32.totalorder %s9, 7
    %p152 = pnand %p150, %p151
    %p153 = pneg %p152
    // Predicated region
    $region29: #{start_transition_forward.2} parent=5 // pred_check
      _
    $region30: #{start_transition_forward.2} parent=5 // pred_check_branch
      %155 = sbr.rel (%p152) target = $region32
    $region31: #{start_transition_forward.2} parent=5 // pred_region
      %s156 = ssub.s32 %s9, 1
      %p157 = scmp.lt.s32.totalorder %s18, 1
      %s158 = scalar_select %p157, %s18, 1
      %s159 = smul.addr %s158, 4
      %s160 = smul.addr %s159, 2
      %s161 = scalar_lea.vmem %s0, %s160
      %p162 = pneg %p47
      %p163 = pneg %p44
      %p164 = pneg %p68
      %p165 = pneg %p65
      %p166 = pneg %p89
      %p167 = pneg %p86
      %p168 = pneg %p117
      %p169 = pneg %p114
      %p170 = scmp.lt.s32.totalorder %s18, 1
      %s171 = scalar_select %p170, %s18, 1
      %p172 = scmp.lt.s32.totalorder %s19, 2
      %s173 = scalar_select %p172, %s19, 2
      %s174 = smul.addr %s171, 3
      %s175 = sadd.s32 %s173, %s174
      %s176 = smul.addr %s175, 8
      %s177 = scalar_lea.vmem %s3, %s176
      %p178 = scmp.lt.s32.totalorder %s18, 1
      %s179 = scalar_select %p178, %s18, 1
      %s180 = smul.addr %s179, 4
      %s181 = smul.addr %s180, 2
      %s182 = scalar_lea.vmem %s0, %s181
      %p183 = scmp.lt.s32.totalorder %s18, 1
      %s184 = scalar_select %p183, %s18, 1
      %p185 = scmp.lt.s32.totalorder %s19, 2
      %s186 = scalar_select %p185, %s19, 2
      %s187 = smul.addr %s184, 3
      %s188 = sadd.s32 %s186, %s187
      %s189 = smul.addr %s188, 8
      %s190 = scalar_lea.vmem %s3, %s189
      %s192 = smul.u32 %s19, 128
      %s193 = sshra.s32 %s192, 7
      %s194 = sand.u32 %s192, 127
      %s195 = smul.addr %s193, 2
      %s196 = scalar_lea.vmem %s182, %s195
      %v197 = vld [vmem:[%s196] sm:$0xf]
      %v198 = vld [vmem:[%s2] sm:$0xff]
      %200 = vset.pattern.permute.xlu0 0
      %201 = vperm.xlu0 %200, %v198
      %v202 = vpop.permute.xlu0 %201
      %v204 = vld [vmem:[%s1] sm:$0xf]
      %vm205 = vcmask 31744
      %v207 = vsel %vm205, %v204, 0
      %vm209 = vcmask 1041408
      %v211 = vsel %vm209, %v197, 0
      %213 = vmatprep.subr.bf16.mxu0 0
      %214 = vmatpush1.bf16.msra.mxu0 0
      %215 = vmatprep.subr.bf16.mxu0 0
      %216 = vmatpush1.bf16.msra.mxu0 0
      %217 = vmatprep.subr.bf16.mxu0 0
      %218 = vmatpush1.bf16.msra.mxu0 0
      %219 = vmatprep.subr.bf16.mxu0 0
      %220 = vmatpush1.bf16.msra.mxu0 0
      %221 = vmatprep.subr.bf16.mxu0 0
      %222 = vmatpush1.bf16.msra.mxu0 0
      %223 = vmatprep.subr.bf16.mxu0 0
      %224 = vmatpush1.bf16.msra.mxu0 0
      %225 = vmatprep.subr.bf16.mxu0 0
      %226 = vmatpush1.bf16.msra.mxu0 0
      %227 = vmatprep.subr.bf16.mxu0 0
      %228 = vmatpush1.bf16.msra.mxu0 %v211
      %229 = vmatprep.subr.bf16.mxu0 0
      %230 = vmatpush2.bf16.msra.mxu0 0
      %231 = vmatprep.subr.bf16.mxu0 0
      %232 = vmatpush2.bf16.msra.mxu0 0
      %233 = vmatprep.subr.bf16.mxu0 0
      %234 = vmatpush2.bf16.msra.mxu0 0
      %235 = vmatprep.subr.bf16.mxu0 0
      %236 = vmatpush2.bf16.msra.mxu0 0
      %237 = vmatprep.subr.bf16.mxu0 0
      %238 = vmatpush2.bf16.msra.mxu0 0
      %239 = vmatprep.subr.bf16.mxu0 0
      %240 = vmatpush2.bf16.msra.mxu0 0
      %241 = vmatprep.subr.bf16.mxu0 0
      %242 = vmatpush2.bf16.msra.mxu0 0
      %243 = vmatprep.subr.bf16.mxu0 0
      %244 = vmatpush2.bf16.msra.mxu0 0
      %245 = vmatprep.mubr.bf16.mxu0 0
      %246 = vmatmul.mubr.bf16.gmra.mxu0 %v207
      %v247 = vpop.f32.mrf.mxu0
      %v248 = vadd.f32 0.0, %v247
      %v249 = vpop.f32.mrf.mxu0
      %v250 = vpop.f32.mrf.mxu0
      %v251 = vpop.f32.mrf.mxu0
      %252 = vdwg.mxu0
      %v253 = vadd.f32 %v202, %v248
      %s254 = scalar_lea.vmem %s1, 4
      %v255 = vld [vmem:[%s254] sm:$0xf]
      %v258 = vunpack.c.l.s4 1983009808
      %v259 = vunpack.c.0.s8 %v258
      %v260 = vlaneseq
      %v261 = vshrl.u32 %v260, 7
      %v262 = vsub.s32 %v259, %v261
      %v263 = vrot.slane %v197, %v262
      %v264 = vcombine.high %v263, %v263
      %265 = vrot.lane.b32.xlu0 %v263, 127
      %v266 = vpop.permute.xlu0 %265
      %267 = vrot.lane.b32.xlu0 %v264, 127
      %v268 = vpop.permute.xlu0 %267
      %vm269 = vcmask 1039360
      %v270 = vsel %vm269, %v266, %v268
      %v272 = vsel %vm205, %v255, 0
      %v275 = vsel %vm209, %v270, 0
      %277 = vmatprep.subr.bf16.mxu0 0
      %278 = vmatpush1.bf16.msra.mxu0 0
      %279 = vmatprep.subr.bf16.mxu0 0
      %280 = vmatpush1.bf16.msra.mxu0 0
      %281 = vmatprep.subr.bf16.mxu0 0
      %282 = vmatpush1.bf16.msra.mxu0 0
      %283 = vmatprep.subr.bf16.mxu0 0
      %284 = vmatpush1.bf16.msra.mxu0 0
      %285 = vmatprep.subr.bf16.mxu0 0
      %286 = vmatpush1.bf16.msra.mxu0 0
      %287 = vmatprep.subr.bf16.mxu0 0
      %288 = vmatpush1.bf16.msra.mxu0 0
      %289 = vmatprep.subr.bf16.mxu0 0
      %290 = vmatpush1.bf16.msra.mxu0 0
      %291 = vmatprep.subr.bf16.mxu0 0
      %292 = vmatpush1.bf16.msra.mxu0 %v275
      %293 = vmatprep.subr.bf16.mxu0 0
      %294 = vmatpush2.bf16.msra.mxu0 0
      %295 = vmatprep.subr.bf16.mxu0 0
      %296 = vmatpush2.bf16.msra.mxu0 0
      %297 = vmatprep.subr.bf16.mxu0 0
      %298 = vmatpush2.bf16.msra.mxu0 0
      %299 = vmatprep.subr.bf16.mxu0 0
      %300 = vmatpush2.bf16.msra.mxu0 0
      %301 = vmatprep.subr.bf16.mxu0 0
      %302 = vmatpush2.bf16.msra.mxu0 0
      %303 = vmatprep.subr.bf16.mxu0 0
      %304 = vmatpush2.bf16.msra.mxu0 0
      %305 = vmatprep.subr.bf16.mxu0 0
      %306 = vmatpush2.bf16.msra.mxu0 0
      %307 = vmatprep.subr.bf16.mxu0 0
      %308 = vmatpush2.bf16.msra.mxu0 0
      %309 = vmatprep.mubr.bf16.mxu0 0
      %310 = vmatmul.mubr.bf16.gmra.mxu0 %v272
      %v311 = vpop.f32.mrf.mxu0
      %v312 = vadd.f32 0.0, %v311
      %v313 = vpop.f32.mrf.mxu0
      %v314 = vpop.f32.mrf.mxu0
      %v315 = vpop.f32.mrf.mxu0
      %316 = vdwg.mxu0
      %v317 = vadd.f32 %v253, %v312
      %s318 = scalar_lea.vmem %s1, 8
      %v319 = vld [vmem:[%s318] sm:$0xf]
      %320 = vrot.lane.b32.xlu0 %v263, 126
      %v321 = vpop.permute.xlu0 %320
      %322 = vrot.lane.b32.xlu0 %v264, 126
      %v323 = vpop.permute.xlu0 %322
      %vm324 = vcmask 1031168
      %v325 = vsel %vm324, %v321, %v323
      %v327 = vsel %vm205, %v319, 0
      %v330 = vsel %vm209, %v325, 0
      %332 = vmatprep.subr.bf16.mxu0 0
      %333 = vmatpush1.bf16.msra.mxu0 0
      %334 = vmatprep.subr.bf16.mxu0 0
      %335 = vmatpush1.bf16.msra.mxu0 0
      %336 = vmatprep.subr.bf16.mxu0 0
      %337 = vmatpush1.bf16.msra.mxu0 0
      %338 = vmatprep.subr.bf16.mxu0 0
      %339 = vmatpush1.bf16.msra.mxu0 0
      %340 = vmatprep.subr.bf16.mxu0 0
      %341 = vmatpush1.bf16.msra.mxu0 0
      %342 = vmatprep.subr.bf16.mxu0 0
      %343 = vmatpush1.bf16.msra.mxu0 0
      %344 = vmatprep.subr.bf16.mxu0 0
      %345 = vmatpush1.bf16.msra.mxu0 0
      %346 = vmatprep.subr.bf16.mxu0 0
      %347 = vmatpush1.bf16.msra.mxu0 %v330
      %348 = vmatprep.subr.bf16.mxu0 0
      %349 = vmatpush2.bf16.msra.mxu0 0
      %350 = vmatprep.subr.bf16.mxu0 0
      %351 = vmatpush2.bf16.msra.mxu0 0
      %352 = vmatprep.subr.bf16.mxu0 0
      %353 = vmatpush2.bf16.msra.mxu0 0
      %354 = vmatprep.subr.bf16.mxu0 0
      %355 = vmatpush2.bf16.msra.mxu0 0
      %356 = vmatprep.subr.bf16.mxu0 0
      %357 = vmatpush2.bf16.msra.mxu0 0
      %358 = vmatprep.subr.bf16.mxu0 0
      %359 = vmatpush2.bf16.msra.mxu0 0
      %360 = vmatprep.subr.bf16.mxu0 0
      %361 = vmatpush2.bf16.msra.mxu0 0
      %362 = vmatprep.subr.bf16.mxu0 0
      %363 = vmatpush2.bf16.msra.mxu0 0
      %364 = vmatprep.mubr.bf16.mxu0 0
      %365 = vmatmul.mubr.bf16.gmra.mxu0 %v327
      %v366 = vpop.f32.mrf.mxu0
      %v367 = vadd.f32 0.0, %v366
      %v368 = vpop.f32.mrf.mxu0
      %v369 = vpop.f32.mrf.mxu0
      %v370 = vpop.f32.mrf.mxu0
      %371 = vdwg.mxu0
      %v372 = vadd.f32 %v317, %v367
      %s373 = scalar_lea.vmem %s1, 12
      %v374 = vld [vmem:[%s373] sm:$0xf]
      %375 = vrot.lane.b32.xlu0 %v263, 110
      %v376 = vpop.permute.xlu0 %375
      %377 = vrot.lane.b32.xlu0 %v264, 110
      %v378 = vpop.permute.xlu0 %377
      %vm379 = vcmask 900096
      %v380 = vsel %vm379, %v376, %v378
      %v382 = vsel %vm205, %v374, 0
      %v385 = vsel %vm209, %v380, 0
      %387 = vmatprep.subr.bf16.mxu0 0
      %388 = vmatpush1.bf16.msra.mxu0 0
      %389 = vmatprep.subr.bf16.mxu0 0
      %390 = vmatpush1.bf16.msra.mxu0 0
      %391 = vmatprep.subr.bf16.mxu0 0
      %392 = vmatpush1.bf16.msra.mxu0 0
      %393 = vmatprep.subr.bf16.mxu0 0
      %394 = vmatpush1.bf16.msra.mxu0 0
      %395 = vmatprep.subr.bf16.mxu0 0
      %396 = vmatpush1.bf16.msra.mxu0 0
      %397 = vmatprep.subr.bf16.mxu0 0
      %398 = vmatpush1.bf16.msra.mxu0 0
      %399 = vmatprep.subr.bf16.mxu0 0
      %400 = vmatpush1.bf16.msra.mxu0 0
      %401 = vmatprep.subr.bf16.mxu0 0
      %402 = vmatpush1.bf16.msra.mxu0 %v385
      %403 = vmatprep.subr.bf16.mxu0 0
      %404 = vmatpush2.bf16.msra.mxu0 0
      %405 = vmatprep.subr.bf16.mxu0 0
      %406 = vmatpush2.bf16.msra.mxu0 0
      %407 = vmatprep.subr.bf16.mxu0 0
      %408 = vmatpush2.bf16.msra.mxu0 0
      %409 = vmatprep.subr.bf16.mxu0 0
      %410 = vmatpush2.bf16.msra.mxu0 0
      %411 = vmatprep.subr.bf16.mxu0 0
      %412 = vmatpush2.bf16.msra.mxu0 0
      %413 = vmatprep.subr.bf16.mxu0 0
      %414 = vmatpush2.bf16.msra.mxu0 0
      %415 = vmatprep.subr.bf16.mxu0 0
      %416 = vmatpush2.bf16.msra.mxu0 0
      %417 = vmatprep.subr.bf16.mxu0 0
      %418 = vmatpush2.bf16.msra.mxu0 0
      %419 = vmatprep.mubr.bf16.mxu0 0
      %420 = vmatmul.mubr.bf16.gmra.mxu0 %v382
      %v421 = vpop.f32.mrf.mxu0
      %v422 = vadd.f32 0.0, %v421
      %v423 = vpop.f32.mrf.mxu0
      %v424 = vpop.f32.mrf.mxu0
      %v425 = vpop.f32.mrf.mxu0
      %426 = vdwg.mxu0
      %v427 = vadd.f32 %v372, %v422
      %s428 = scalar_lea.vmem %s1, 16
      %v429 = vld [vmem:[%s428] sm:$0xf]
      %430 = vrot.lane.b32.xlu0 %v263, 109
      %v431 = vpop.permute.xlu0 %430
      %432 = vrot.lane.b32.xlu0 %v264, 109
      %v433 = vpop.permute.xlu0 %432
      %vm434 = vcmask 891904
      %v435 = vsel %vm434, %v431, %v433
      %v437 = vsel %vm205, %v429, 0
      %v440 = vsel %vm209, %v435, 0
      %442 = vmatprep.subr.bf16.mxu0 0
      %443 = vmatpush1.bf16.msra.mxu0 0
      %444 = vmatprep.subr.bf16.mxu0 0
      %445 = vmatpush1.bf16.msra.mxu0 0
      %446 = vmatprep.subr.bf16.mxu0 0
      %447 = vmatpush1.bf16.msra.mxu0 0
      %448 = vmatprep.subr.bf16.mxu0 0
      %449 = vmatpush1.bf16.msra.mxu0 0
      %450 = vmatprep.subr.bf16.mxu0 0
      %451 = vmatpush1.bf16.msra.mxu0 0
      %452 = vmatprep.subr.bf16.mxu0 0
      %453 = vmatpush1.bf16.msra.mxu0 0
      %454 = vmatprep.subr.bf16.mxu0 0
      %455 = vmatpush1.bf16.msra.mxu0 0
      %456 = vmatprep.subr.bf16.mxu0 0
      %457 = vmatpush1.bf16.msra.mxu0 %v440
      %458 = vmatprep.subr.bf16.mxu0 0
      %459 = vmatpush2.bf16.msra.mxu0 0
      %460 = vmatprep.subr.bf16.mxu0 0
      %461 = vmatpush2.bf16.msra.mxu0 0
      %462 = vmatprep.subr.bf16.mxu0 0
      %463 = vmatpush2.bf16.msra.mxu0 0
      %464 = vmatprep.subr.bf16.mxu0 0
      %465 = vmatpush2.bf16.msra.mxu0 0
      %466 = vmatprep.subr.bf16.mxu0 0
      %467 = vmatpush2.bf16.msra.mxu0 0
      %468 = vmatprep.subr.bf16.mxu0 0
      %469 = vmatpush2.bf16.msra.mxu0 0
      %470 = vmatprep.subr.bf16.mxu0 0
      %471 = vmatpush2.bf16.msra.mxu0 0
      %472 = vmatprep.subr.bf16.mxu0 0
      %473 = vmatpush2.bf16.msra.mxu0 0
      %474 = vmatprep.mubr.bf16.mxu0 0
      %475 = vmatmul.mubr.bf16.gmra.mxu0 %v437
      %v476 = vpop.f32.mrf.mxu0
      %v477 = vadd.f32 0.0, %v476
      %v478 = vpop.f32.mrf.mxu0
      %v479 = vpop.f32.mrf.mxu0
      %v480 = vpop.f32.mrf.mxu0
      %481 = vdwg.mxu0
      %v482 = vadd.f32 %v427, %v477
      %s483 = scalar_lea.vmem %s1, 20
      %v484 = vld [vmem:[%s483] sm:$0xf]
      %485 = vrot.lane.b32.xlu0 %v263, 108
      %v486 = vpop.permute.xlu0 %485
      %487 = vrot.lane.b32.xlu0 %v264, 108
      %v488 = vpop.permute.xlu0 %487
      %vm489 = vcmask 883712
      %v490 = vsel %vm489, %v486, %v488
      %v492 = vsel %vm205, %v484, 0
      %v495 = vsel %vm209, %v490, 0
      %497 = vmatprep.subr.bf16.mxu0 0
      %498 = vmatpush1.bf16.msra.mxu0 0
      %499 = vmatprep.subr.bf16.mxu0 0
      %500 = vmatpush1.bf16.msra.mxu0 0
      %501 = vmatprep.subr.bf16.mxu0 0
      %502 = vmatpush1.bf16.msra.mxu0 0
      %503 = vmatprep.subr.bf16.mxu0 0
      %504 = vmatpush1.bf16.msra.mxu0 0
      %505 = vmatprep.subr.bf16.mxu0 0
      %506 = vmatpush1.bf16.msra.mxu0 0
      %507 = vmatprep.subr.bf16.mxu0 0
      %508 = vmatpush1.bf16.msra.mxu0 0
      %509 = vmatprep.subr.bf16.mxu0 0
      %510 = vmatpush1.bf16.msra.mxu0 0
      %511 = vmatprep.subr.bf16.mxu0 0
      %512 = vmatpush1.bf16.msra.mxu0 %v495
      %513 = vmatprep.subr.bf16.mxu0 0
      %514 = vmatpush2.bf16.msra.mxu0 0
      %515 = vmatprep.subr.bf16.mxu0 0
      %516 = vmatpush2.bf16.msra.mxu0 0
      %517 = vmatprep.subr.bf16.mxu0 0
      %518 = vmatpush2.bf16.msra.mxu0 0
      %519 = vmatprep.subr.bf16.mxu0 0
      %520 = vmatpush2.bf16.msra.mxu0 0
      %521 = vmatprep.subr.bf16.mxu0 0
      %522 = vmatpush2.bf16.msra.mxu0 0
      %523 = vmatprep.subr.bf16.mxu0 0
      %524 = vmatpush2.bf16.msra.mxu0 0
      %525 = vmatprep.subr.bf16.mxu0 0
      %526 = vmatpush2.bf16.msra.mxu0 0
      %527 = vmatprep.subr.bf16.mxu0 0
      %528 = vmatpush2.bf16.msra.mxu0 0
      %529 = vmatprep.mubr.bf16.mxu0 0
      %530 = vmatmul.mubr.bf16.gmra.mxu0 %v492
      %v531 = vpop.f32.mrf.mxu0
      %v532 = vadd.f32 0.0, %v531
      %v533 = vpop.f32.mrf.mxu0
      %v534 = vpop.f32.mrf.mxu0
      %v535 = vpop.f32.mrf.mxu0
      %536 = vdwg.mxu0
      %v537 = vadd.f32 %v482, %v532
      %s538 = scalar_lea.vmem %s1, 24
      %v539 = vld [vmem:[%s538] sm:$0xf]
      %540 = vrot.lane.b32.xlu0 %v263, 92
      %v541 = vpop.permute.xlu0 %540
      %542 = vrot.lane.b32.xlu0 %v264, 92
      %v543 = vpop.permute.xlu0 %542
      %vm544 = vcmask 752640
      %v545 = vsel %vm544, %v541, %v543
      %v547 = vsel %vm205, %v539, 0
      %v550 = vsel %vm209, %v545, 0
      %552 = vmatprep.subr.bf16.mxu0 0
      %553 = vmatpush1.bf16.msra.mxu0 0
      %554 = vmatprep.subr.bf16.mxu0 0
      %555 = vmatpush1.bf16.msra.mxu0 0
      %556 = vmatprep.subr.bf16.mxu0 0
      %557 = vmatpush1.bf16.msra.mxu0 0
      %558 = vmatprep.subr.bf16.mxu0 0
      %559 = vmatpush1.bf16.msra.mxu0 0
      %560 = vmatprep.subr.bf16.mxu0 0
      %561 = vmatpush1.bf16.msra.mxu0 0
      %562 = vmatprep.subr.bf16.mxu0 0
      %563 = vmatpush1.bf16.msra.mxu0 0
      %564 = vmatprep.subr.bf16.mxu0 0
      %565 = vmatpush1.bf16.msra.mxu0 0
      %566 = vmatprep.subr.bf16.mxu0 0
      %567 = vmatpush1.bf16.msra.mxu0 %v550
      %568 = vmatprep.subr.bf16.mxu0 0
      %569 = vmatpush2.bf16.msra.mxu0 0
      %570 = vmatprep.subr.bf16.mxu0 0
      %571 = vmatpush2.bf16.msra.mxu0 0
      %572 = vmatprep.subr.bf16.mxu0 0
      %573 = vmatpush2.bf16.msra.mxu0 0
      %574 = vmatprep.subr.bf16.mxu0 0
      %575 = vmatpush2.bf16.msra.mxu0 0
      %576 = vmatprep.subr.bf16.mxu0 0
      %577 = vmatpush2.bf16.msra.mxu0 0
      %578 = vmatprep.subr.bf16.mxu0 0
      %579 = vmatpush2.bf16.msra.mxu0 0
      %580 = vmatprep.subr.bf16.mxu0 0
      %581 = vmatpush2.bf16.msra.mxu0 0
      %582 = vmatprep.subr.bf16.mxu0 0
      %583 = vmatpush2.bf16.msra.mxu0 0
      %584 = vmatprep.mubr.bf16.mxu0 0
      %585 = vmatmul.mubr.bf16.gmra.mxu0 %v547
      %v586 = vpop.f32.mrf.mxu0
      %v587 = vadd.f32 0.0, %v586
      %v588 = vpop.f32.mrf.mxu0
      %v589 = vpop.f32.mrf.mxu0
      %v590 = vpop.f32.mrf.mxu0
      %591 = vdwg.mxu0
      %v592 = vadd.f32 %v537, %v587
      %s593 = scalar_lea.vmem %s1, 28
      %v594 = vld [vmem:[%s593] sm:$0xf]
      %595 = vrot.lane.b32.xlu0 %v263, 91
      %v596 = vpop.permute.xlu0 %595
      %597 = vrot.lane.b32.xlu0 %v264, 91
      %v598 = vpop.permute.xlu0 %597
      %vm599 = vcmask 744448
      %v600 = vsel %vm599, %v596, %v598
      %v602 = vsel %vm205, %v594, 0
      %v605 = vsel %vm209, %v600, 0
      %607 = vmatprep.subr.bf16.mxu0 0
      %608 = vmatpush1.bf16.msra.mxu0 0
      %609 = vmatprep.subr.bf16.mxu0 0
      %610 = vmatpush1.bf16.msra.mxu0 0
      %611 = vmatprep.subr.bf16.mxu0 0
      %612 = vmatpush1.bf16.msra.mxu0 0
      %613 = vmatprep.subr.bf16.mxu0 0
      %614 = vmatpush1.bf16.msra.mxu0 0
      %615 = vmatprep.subr.bf16.mxu0 0
      %616 = vmatpush1.bf16.msra.mxu0 0
      %617 = vmatprep.subr.bf16.mxu0 0
      %618 = vmatpush1.bf16.msra.mxu0 0
      %619 = vmatprep.subr.bf16.mxu0 0
      %620 = vmatpush1.bf16.msra.mxu0 0
      %621 = vmatprep.subr.bf16.mxu0 0
      %622 = vmatpush1.bf16.msra.mxu0 %v605
      %623 = vmatprep.subr.bf16.mxu0 0
      %624 = vmatpush2.bf16.msra.mxu0 0
      %625 = vmatprep.subr.bf16.mxu0 0
      %626 = vmatpush2.bf16.msra.mxu0 0
      %627 = vmatprep.subr.bf16.mxu0 0
      %628 = vmatpush2.bf16.msra.mxu0 0
      %629 = vmatprep.subr.bf16.mxu0 0
      %630 = vmatpush2.bf16.msra.mxu0 0
      %631 = vmatprep.subr.bf16.mxu0 0
      %632 = vmatpush2.bf16.msra.mxu0 0
      %633 = vmatprep.subr.bf16.mxu0 0
      %634 = vmatpush2.bf16.msra.mxu0 0
      %635 = vmatprep.subr.bf16.mxu0 0
      %636 = vmatpush2.bf16.msra.mxu0 0
      %637 = vmatprep.subr.bf16.mxu0 0
      %638 = vmatpush2.bf16.msra.mxu0 0
      %639 = vmatprep.mubr.bf16.mxu0 0
      %640 = vmatmul.mubr.bf16.gmra.mxu0 %v602
      %v641 = vpop.f32.mrf.mxu0
      %v642 = vadd.f32 0.0, %v641
      %v643 = vpop.f32.mrf.mxu0
      %v644 = vpop.f32.mrf.mxu0
      %v645 = vpop.f32.mrf.mxu0
      %646 = vdwg.mxu0
      %v647 = vadd.f32 %v592, %v642
      %s648 = scalar_lea.vmem %s1, 32
      %v649 = vld [vmem:[%s648] sm:$0xf]
      %650 = vrot.lane.b32.xlu0 %v263, 90
      %v651 = vpop.permute.xlu0 %650
      %652 = vrot.lane.b32.xlu0 %v264, 90
      %v653 = vpop.permute.xlu0 %652
      %vm654 = vcmask 736256
      %v655 = vsel %vm654, %v651, %v653
      %v657 = vsel %vm205, %v649, 0
      %v660 = vsel %vm209, %v655, 0
      %662 = vmatprep.subr.bf16.mxu0 0
      %663 = vmatpush1.bf16.msra.mxu0 0
      %664 = vmatprep.subr.bf16.mxu0 0
      %665 = vmatpush1.bf16.msra.mxu0 0
      %666 = vmatprep.subr.bf16.mxu0 0
      %667 = vmatpush1.bf16.msra.mxu0 0
      %668 = vmatprep.subr.bf16.mxu0 0
      %669 = vmatpush1.bf16.msra.mxu0 0
      %670 = vmatprep.subr.bf16.mxu0 0
      %671 = vmatpush1.bf16.msra.mxu0 0
      %672 = vmatprep.subr.bf16.mxu0 0
      %673 = vmatpush1.bf16.msra.mxu0 0
      %674 = vmatprep.subr.bf16.mxu0 0
      %675 = vmatpush1.bf16.msra.mxu0 0
      %676 = vmatprep.subr.bf16.mxu0 0
      %677 = vmatpush1.bf16.msra.mxu0 %v660
      %678 = vmatprep.subr.bf16.mxu0 0
      %679 = vmatpush2.bf16.msra.mxu0 0
      %680 = vmatprep.subr.bf16.mxu0 0
      %681 = vmatpush2.bf16.msra.mxu0 0
      %682 = vmatprep.subr.bf16.mxu0 0
      %683 = vmatpush2.bf16.msra.mxu0 0
      %684 = vmatprep.subr.bf16.mxu0 0
      %685 = vmatpush2.bf16.msra.mxu0 0
      %686 = vmatprep.subr.bf16.mxu0 0
      %687 = vmatpush2.bf16.msra.mxu0 0
      %688 = vmatprep.subr.bf16.mxu0 0
      %689 = vmatpush2.bf16.msra.mxu0 0
      %690 = vmatprep.subr.bf16.mxu0 0
      %691 = vmatpush2.bf16.msra.mxu0 0
      %692 = vmatprep.subr.bf16.mxu0 0
      %693 = vmatpush2.bf16.msra.mxu0 0
      %694 = vmatprep.mubr.bf16.mxu0 0
      %695 = vmatmul.mubr.bf16.gmra.mxu0 %v657
      %v696 = vpop.f32.mrf.mxu0
      %v697 = vadd.f32 0.0, %v696
      %v698 = vpop.f32.mrf.mxu0
      %v699 = vpop.f32.mrf.mxu0
      %v700 = vpop.f32.mrf.mxu0
      %701 = vdwg.mxu0
      %v702 = vadd.f32 %v647, %v697
      %v703 = vmax.f32 %v702, 0.0
      %704 = vst [vmem:[%s190] sm:$0xff] %v703
      %p705 = scmp.lt.s32.totalorder %s18, 1
      %s706 = scalar_select %p705, %s18, 1
      %p707 = scmp.lt.s32.totalorder %s19, 2
      %s708 = scalar_select %p707, %s19, 2
      %s709 = smul.addr %s706, 3
      %s710 = sadd.s32 %s708, %s709
      %s711 = smul.addr %s710, 8
      %s712 = scalar_lea.vmem %s3, %s711
      // Predicated region
      $region33: #{start_transition_forward.2} parent=31 // pred_check
        %p713 = pneg %p114
      $region34: #{start_transition_forward.2} parent=31 // pred_check_branch
        %715 = sbr.rel (%p713) target = $region36
      $region35: #{start_transition_forward.2} parent=31 // pred_region
        _
      $region36: #{start_transition_forward.2} parent=31 // pred_fallthru
        _
    $region32: #{start_transition_forward.2} parent=5 // pred_fallthru
      _
    %p716 = scmp.le.s32.totalorder 2, %s9
    // Predicated region
    $region37: #{start_transition_forward.2} parent=5 // pred_check
      %p717 = pneg %p716
    $region38: #{start_transition_forward.2} parent=5 // pred_check_branch
      %719 = sbr.rel (%p717) target = $region40
    $region39: #{start_transition_forward.2} parent=5 // pred_region
      %s720 = ssub.s32 %s9, 2
      // Predicated region
      $region41: #{start_transition_forward.2} parent=39 // pred_check
        %p721 = pneg %p120
      $region42: #{start_transition_forward.2} parent=39 // pred_check_branch
        %723 = sbr.rel (%p721) target = $region44
      $region43: #{start_transition_forward.2} parent=39 // pred_region
        %p724 = scmp.lt.s32.totalorder %s20, 1
        %s725 = scalar_select %p724, %s20, 1
        %p726 = scmp.lt.s32.totalorder %s21, 2
        %s727 = scalar_select %p726, %s21, 2
        %s728 = smul.addr %s725, 3
        %s729 = sadd.s32 %s727, %s728
        %s730 = smul.addr %s729, 8
        %s731 = scalar_lea.vmem %s3, %s730
      $region44: #{start_transition_forward.2} parent=39 // pred_fallthru
        _
    $region40: #{start_transition_forward.2} parent=5 // pred_fallthru
      _
  $region6: #{start_transition_forward.2} parent=0 // loop_footer
    %s13 = sadd.s32 1, %s9
  $region7: #{start_transition_forward.2} parent=0 // loop_footer_branch
    %8 = sbr.rel target = $region3
  $region8: #{start_transition_forward.2} parent=0 // loop_exit
    _

// kernel: start_transition_forward.3
$region0: #{start_transition_forward.3}
  #allocation0 [shape = 'u32[]', space=smem, size = 0x4, offset = 0x4, fixed_abs, tag = 'smem constant byte address 0x4 - core index']
  #allocation1 [shape = 'u32[144,128]{1,0:T(1,128)}', space=vmem, size = 0x12000, scoped, tag = 'internal scratch']
  %s0 = inlined_call_operand.vmem [shape: bf16[2,4,256], index: 0, kind: input, shape index: {}]
  %s1 = inlined_call_operand.vmem [shape: bf16[2,4,256], index: 1, kind: input, shape index: {}]
  %s2 = inlined_call_operand.vmem [shape: bf16[2,4,256], index: 2, kind: input, shape index: {}]
  %s3 = inlined_call_operand.vmem [shape: bf16[2,4,256], index: 3, kind: input, shape index: {}]
  %s4 = inlined_call_operand.vmem [shape: bf16[9,16,4], index: 4, kind: input, shape index: {}]
  %s5 = inlined_call_operand.vmem [shape: f32[16,1], index: 5, kind: input, shape index: {}]
  %s6 = inlined_call_operand.vmem [shape: f32[2,16,128], index: 6, kind: output, shape index: {}]
  %s7 = sld [smem:[#allocation0]]
  $region57: #{start_transition_forward.3} parent=0
    _
  %s9 = ssub.s32 1, %s7
  %s10 = scalar_select 0, %s9, %s7
  loop: start=0, step=1, limit=4
  $region2: #{start_transition_forward.3} parent=0 // loop_pre_header
    _
  $region3: #{start_transition_forward.3} parent=0 // loop_header
    %s12 = sphi 0, %s16
    %p13 = scmp.ge.s32.totalorder %s12, 4
    %s19 = sphi 0, %s31
    %s20 = sphi 0, %s27
    %s21 = sphi 0, %s19
    %s22 = sphi 0, %s20
    %s23 = sphi 0, %s21
    %s24 = sphi 0, %s22
    %s34 = sphi 0, %s36
    %s37 = sphi 0, %s34
    %s38 = sphi 0, %s37
    %s54 = sphi 0, %s38
    %s60 = sphi 0, %s62
    %s63 = sphi 0, %s60
    %s64 = sphi 0, %s63
    %s80 = sphi 0, %s64
    %s86 = sphi 0, %s88
    %s89 = sphi 0, %s86
    %s90 = sphi 0, %s89
    %s106 = sphi 0, %s90
    %s112 = sphi 0, %s114
    %s115 = sphi 0, %s112
    %s116 = sphi 0, %s115
    %s132 = sphi 0, %s116
    %s136 = sphi 0, %s136
    %s138 = sphi 0, %s136
    %s139 = sphi 0, %s138
    %s153 = sphi 0, %s139
    %s157 = sphi 0, %s157
    %s159 = sphi 0, %s157
    %s160 = sphi 0, %s159
    %s174 = sphi 0, %s160
    %s182 = sphi 0, %s184
    %s185 = sphi 0, %s182
    %s186 = sphi 0, %s185
    %s202 = sphi 0, %s186
  $region4: #{start_transition_forward.3} parent=0 // loop_header_branch
    %15 = sbr.rel (%p13) target = $region8
  $region5: #{start_transition_forward.3} parent=0 // loop_body
    %s17 = ssub.s32 %s12, 1
    %s18 = ssub.s32 %s12, 2
    %s25 = sadd.s32 1, %s20
    %p26 = scmp.ge.s32.totalorder %s25, 1
    %s27 = scalar_select %p26, 0, %s25
    %s28 = sadd.s32 1, %s19
    %s29 = scalar_select %p26, %s28, %s19
    %p30 = scmp.ge.s32.totalorder %s29, 2
    %s31 = scalar_select %p30, 0, %s29
    %s32 = ssub.s32 %s19, %s31
    %p33 = scmp.eq.s32.totalorder %s32, 0
    %s35 = sadd.s32 %s34, 1
    %s36 = scalar_select %p33, %s34, %s35
    %p39 = pneg %p33
    %p40 = scmp.eq.s32.totalorder %s12, 1
    %p41 = por %p39, %p40
    %p42 = scmp.ne.s32.totalorder %s34, %s37
    %p43 = scmp.eq.s32.totalorder %s12, 0
    %p44 = por %p42, %p43
    %p45 = scmp.ne.s32.totalorder %s34, %s37
    %p46 = scmp.eq.s32.totalorder %s17, 1
    %p47 = por %p45, %p46
    %p48 = scmp.ne.s32.totalorder %s37, %s38
    %p49 = scmp.eq.s32.totalorder %s17, 0
    %p50 = por %p48, %p49
    %p51 = scmp.ne.s32.totalorder %s37, %s38
    %p52 = scmp.eq.s32.totalorder %s18, 1
    %p53 = por %p51, %p52
    %p55 = scmp.ne.s32.totalorder %s38, %s54
    %p56 = scmp.eq.s32.totalorder %s18, 0
    %p57 = por %p55, %p56
    %s58 = ssub.s32 %s19, %s31
    %p59 = scmp.eq.s32.totalorder %s58, 0
    %s61 = sadd.s32 %s60, 1
    %s62 = scalar_select %p59, %s60, %s61
    %p65 = pneg %p59
    %p66 = scmp.eq.s32.totalorder %s12, 1
    %p67 = por %p65, %p66
    %p68 = scmp.ne.s32.totalorder %s60, %s63
    %p69 = scmp.eq.s32.totalorder %s12, 0
    %p70 = por %p68, %p69
    %p71 = scmp.ne.s32.totalorder %s60, %s63
    %p72 = scmp.eq.s32.totalorder %s17, 1
    %p73 = por %p71, %p72
    %p74 = scmp.ne.s32.totalorder %s63, %s64
    %p75 = scmp.eq.s32.totalorder %s17, 0
    %p76 = por %p74, %p75
    %p77 = scmp.ne.s32.totalorder %s63, %s64
    %p78 = scmp.eq.s32.totalorder %s18, 1
    %p79 = por %p77, %p78
    %p81 = scmp.ne.s32.totalorder %s64, %s80
    %p82 = scmp.eq.s32.totalorder %s18, 0
    %p83 = por %p81, %p82
    %s84 = ssub.s32 %s19, %s31
    %p85 = scmp.eq.s32.totalorder %s84, 0
    %s87 = sadd.s32 %s86, 1
    %s88 = scalar_select %p85, %s86, %s87
    %p91 = pneg %p85
    %p92 = scmp.eq.s32.totalorder %s12, 1
    %p93 = por %p91, %p92
    %p94 = scmp.ne.s32.totalorder %s86, %s89
    %p95 = scmp.eq.s32.totalorder %s12, 0
    %p96 = por %p94, %p95
    %p97 = scmp.ne.s32.totalorder %s86, %s89
    %p98 = scmp.eq.s32.totalorder %s17, 1
    %p99 = por %p97, %p98
    %p100 = scmp.ne.s32.totalorder %s89, %s90
    %p101 = scmp.eq.s32.totalorder %s17, 0
    %p102 = por %p100, %p101
    %p103 = scmp.ne.s32.totalorder %s89, %s90
    %p104 = scmp.eq.s32.totalorder %s18, 1
    %p105 = por %p103, %p104
    %p107 = scmp.ne.s32.totalorder %s90, %s106
    %p108 = scmp.eq.s32.totalorder %s18, 0
    %p109 = por %p107, %p108
    %s110 = ssub.s32 %s19, %s31
    %p111 = scmp.eq.s32.totalorder %s110, 0
    %s113 = sadd.s32 %s112, 1
    %s114 = scalar_select %p111, %s112, %s113
    %p117 = pneg %p111
    %p118 = scmp.eq.s32.totalorder %s12, 1
    %p119 = por %p117, %p118
    %p120 = scmp.ne.s32.totalorder %s112, %s115
    %p121 = scmp.eq.s32.totalorder %s12, 0
    %p122 = por %p120, %p121
    %p123 = scmp.ne.s32.totalorder %s112, %s115
    %p124 = scmp.eq.s32.totalorder %s17, 1
    %p125 = por %p123, %p124
    %p126 = scmp.ne.s32.totalorder %s115, %s116
    %p127 = scmp.eq.s32.totalorder %s17, 0
    %p128 = por %p126, %p127
    %p129 = scmp.ne.s32.totalorder %s115, %s116
    %p130 = scmp.eq.s32.totalorder %s18, 1
    %p131 = por %p129, %p130
    %p133 = scmp.ne.s32.totalorder %s116, %s132
    %p134 = scmp.eq.s32.totalorder %s18, 0
    %p135 = por %p133, %p134
    %s137 = sadd.s32 %s136, 1
    %p140 = scmp.eq.s32.totalorder %s12, 1
    %p141 = scmp.ne.s32.totalorder %s136, %s138
    %p142 = scmp.eq.s32.totalorder %s12, 0
    %p143 = por %p141, %p142
    %p144 = scmp.ne.s32.totalorder %s136, %s138
    %p145 = scmp.eq.s32.totalorder %s17, 1
    %p146 = por %p144, %p145
    %p147 = scmp.ne.s32.totalorder %s138, %s139
    %p148 = scmp.eq.s32.totalorder %s17, 0
    %p149 = por %p147, %p148
    %p150 = scmp.ne.s32.totalorder %s138, %s139
    %p151 = scmp.eq.s32.totalorder %s18, 1
    %p152 = por %p150, %p151
    %p154 = scmp.ne.s32.totalorder %s139, %s153
    %p155 = scmp.eq.s32.totalorder %s18, 0
    %p156 = por %p154, %p155
    %s158 = sadd.s32 %s157, 1
    %p161 = scmp.eq.s32.totalorder %s12, 1
    %p162 = scmp.ne.s32.totalorder %s157, %s159
    %p163 = scmp.eq.s32.totalorder %s12, 0
    %p164 = por %p162, %p163
    %p165 = scmp.ne.s32.totalorder %s157, %s159
    %p166 = scmp.eq.s32.totalorder %s17, 1
    %p167 = por %p165, %p166
    %p168 = scmp.ne.s32.totalorder %s159, %s160
    %p169 = scmp.eq.s32.totalorder %s17, 0
    %p170 = por %p168, %p169
    %p171 = scmp.ne.s32.totalorder %s159, %s160
    %p172 = scmp.eq.s32.totalorder %s18, 1
    %p173 = por %p171, %p172
    %p175 = scmp.ne.s32.totalorder %s160, %s174
    %p176 = scmp.eq.s32.totalorder %s18, 0
    %p177 = por %p175, %p176
    %s178 = ssub.s32 %s19, %s31
    %s179 = ssub.s32 %s20, %s27
    %s180 = sor.u32 %s178, %s179
    %p181 = scmp.eq.s32.totalorder %s180, 0
    %s183 = sadd.s32 %s182, 1
    %s184 = scalar_select %p181, %s182, %s183
    %p187 = pneg %p181
    %p188 = scmp.eq.s32.totalorder %s12, 1
    %p189 = por %p187, %p188
    %p190 = scmp.ne.s32.totalorder %s182, %s185
    %p191 = scmp.eq.s32.totalorder %s12, 0
    %p192 = por %p190, %p191
    %p193 = scmp.ne.s32.totalorder %s182, %s185
    %p194 = scmp.eq.s32.totalorder %s17, 1
    %p195 = por %p193, %p194
    %p196 = scmp.ne.s32.totalorder %s185, %s186
    %p197 = scmp.eq.s32.totalorder %s17, 0
    %p198 = por %p196, %p197
    %p199 = scmp.ne.s32.totalorder %s185, %s186
    %p200 = scmp.eq.s32.totalorder %s18, 1
    %p201 = por %p199, %p200
    %p203 = scmp.ne.s32.totalorder %s186, %s202
    %p204 = scmp.eq.s32.totalorder %s18, 0
    %p205 = por %p203, %p204
    %p206 = scmp.le.s32.totalorder 1, %s12
    %p207 = scmp.lt.s32.totalorder %s12, 3
    %p208 = pnand %p206, %p207
    %p209 = pneg %p208
    // Predicated region
    $region9: #{start_transition_forward.3} parent=5 // pred_check
      _
    $region10: #{start_transition_forward.3} parent=5 // pred_check_branch
      %211 = sbr.rel (%p208) target = $region12
    $region11: #{start_transition_forward.3} parent=5 // pred_region
      %s212 = ssub.s32 %s12, 1
      // Predicated region
      $region13: #{start_transition_forward.3} parent=11 // pred_check
        %p213 = pneg %p149
      $region14: #{start_transition_forward.3} parent=11 // pred_check_branch
        %215 = sbr.rel (%p213) target = $region16
      $region15: #{start_transition_forward.3} parent=11 // pred_region
        _
      $region16: #{start_transition_forward.3} parent=11 // pred_fallthru
        _
      // Predicated region
      $region17: #{start_transition_forward.3} parent=11 // pred_check
        %p216 = pneg %p170
      $region18: #{start_transition_forward.3} parent=11 // pred_check_branch
        %218 = sbr.rel (%p216) target = $region20
      $region19: #{start_transition_forward.3} parent=11 // pred_region
        _
      $region20: #{start_transition_forward.3} parent=11 // pred_fallthru
        _
    $region12: #{start_transition_forward.3} parent=5 // pred_fallthru
      _
    %p219 = scmp.lt.s32.totalorder %s12, 2
    // Predicated region
    $region21: #{start_transition_forward.3} parent=5 // pred_check
      %p220 = pneg %p219
    $region22: #{start_transition_forward.3} parent=5 // pred_check_branch
      %222 = sbr.rel (%p220) target = $region24
    $region23: #{start_transition_forward.3} parent=5 // pred_region
      // Predicated region
      $region25: #{start_transition_forward.3} parent=23 // pred_check
        %p223 = pneg %p44
      $region26: #{start_transition_forward.3} parent=23 // pred_check_branch
        %225 = sbr.rel (%p223) target = $region28
      $region27: #{start_transition_forward.3} parent=23 // pred_region
        %p226 = scmp.lt.s32.totalorder %s19, 1
        %s227 = scalar_select %p226, %s19, 1
        %s228 = smul.addr %s227, 2
        %s229 = smul.addr %s228, 2
        %s230 = scalar_lea.vmem %s0, %s229
      $region28: #{start_transition_forward.3} parent=23 // pred_fallthru
        _
      // Predicated region
      $region29: #{start_transition_forward.3} parent=23 // pred_check
        %p231 = pneg %p70
      $region30: #{start_transition_forward.3} parent=23 // pred_check_branch
        %233 = sbr.rel (%p231) target = $region32
      $region31: #{start_transition_forward.3} parent=23 // pred_region
        %p234 = scmp.lt.s32.totalorder %s19, 1
        %s235 = scalar_select %p234, %s19, 1
        %s236 = smul.addr %s235, 2
        %s237 = smul.addr %s236, 2
        %s238 = scalar_lea.vmem %s1, %s237
      $region32: #{start_transition_forward.3} parent=23 // pred_fallthru
        _
      // Predicated region
      $region33: #{start_transition_forward.3} parent=23 // pred_check
        %p239 = pneg %p96
      $region34: #{start_transition_forward.3} parent=23 // pred_check_branch
        %241 = sbr.rel (%p239) target = $region36
      $region35: #{start_transition_forward.3} parent=23 // pred_region
        %p242 = scmp.lt.s32.totalorder %s19, 1
        %s243 = scalar_select %p242, %s19, 1
        %s244 = smul.addr %s243, 2
        %s245 = smul.addr %s244, 2
        %s246 = scalar_lea.vmem %s2, %s245
      $region36: #{start_transition_forward.3} parent=23 // pred_fallthru
        _
      // Predicated region
      $region37: #{start_transition_forward.3} parent=23 // pred_check
        %p247 = pneg %p122
      $region38: #{start_transition_forward.3} parent=23 // pred_check_branch
        %249 = sbr.rel (%p247) target = $region40
      $region39: #{start_transition_forward.3} parent=23 // pred_region
        %p250 = scmp.lt.s32.totalorder %s19, 1
        %s251 = scalar_select %p250, %s19, 1
        %s252 = smul.addr %s251, 2
        %s253 = smul.addr %s252, 2
        %s254 = scalar_lea.vmem %s3, %s253
      $region40: #{start_transition_forward.3} parent=23 // pred_fallthru
        _
    $region24: #{start_transition_forward.3} parent=5 // pred_fallthru
      _
    %p255 = scmp.le.s32.totalorder 1, %s12
    %p256 = scmp.lt.s32.totalorder %s12, 3
    %p257 = pnand %p255, %p256
    %p258 = pneg %p257
    // Predicated region
    $region41: #{start_transition_forward.3} parent=5 // pred_check
      _
    $region42: #{start_transition_forward.3} parent=5 // pred_check_branch
      %260 = sbr.rel (%p257) target = $region44
    $region43: #{start_transition_forward.3} parent=5 // pred_region
      %s261 = ssub.s32 %s12, 1
      %p262 = scmp.lt.s32.totalorder %s21, 1
      %s263 = scalar_select %p262, %s21, 1
      %s264 = smul.addr %s263, 2
      %s265 = smul.addr %s264, 2
      %s266 = scalar_lea.vmem %s0, %s265
      %p267 = pneg %p50
      %p268 = pneg %p47
      %p269 = scmp.lt.s32.totalorder %s21, 1
      %s270 = scalar_select %p269, %s21, 1
      %s271 = smul.addr %s270, 2
      %s272 = smul.addr %s271, 2
      %s273 = scalar_lea.vmem %s1, %s272
      %p274 = pneg %p76
      %p275 = pneg %p73
      %p276 = scmp.lt.s32.totalorder %s21, 1
      %s277 = scalar_select %p276, %s21, 1
      %s278 = smul.addr %s277, 2
      %s279 = smul.addr %s278, 2
      %s280 = scalar_lea.vmem %s2, %s279
      %p281 = pneg %p102
      %p282 = pneg %p99
      %p283 = scmp.lt.s32.totalorder %s21, 1
      %s284 = scalar_select %p283, %s21, 1
      %s285 = smul.addr %s284, 2
      %s286 = smul.addr %s285, 2
      %s287 = scalar_lea.vmem %s3, %s286
      %p288 = pneg %p128
      %p289 = pneg %p125
      %p290 = pneg %p149
      %p291 = pneg %p146
      %p292 = pneg %p170
      %p293 = pneg %p167
      %p294 = pneg %p198
      %p295 = pneg %p195
      %p296 = scmp.lt.s32.totalorder %s21, 1
      %s297 = scalar_select %p296, %s21, 1
      %p298 = scmp.lt.s32.totalorder %s22, 0
      %s299 = scalar_select %p298, %s22, 0
      %s300 = smul.addr %s297, 2
      %s301 = sadd.s32 %s299, %s300
      %s302 = smul.addr %s301, 8
      %s303 = scalar_lea.vmem %s6, %s302
      %p304 = scmp.lt.s32.totalorder %s21, 1
      %s305 = scalar_select %p304, %s21, 1
      %s306 = smul.addr %s305, 2
      %s307 = smul.addr %s306, 2
      %s308 = scalar_lea.vmem %s0, %s307
      %p309 = scmp.lt.s32.totalorder %s21, 1
      %s310 = scalar_select %p309, %s21, 1
      %s311 = smul.addr %s310, 2
      %s312 = smul.addr %s311, 2
      %s313 = scalar_lea.vmem %s1, %s312
      %p314 = scmp.lt.s32.totalorder %s21, 1
      %s315 = scalar_select %p314, %s21, 1
      %s316 = smul.addr %s315, 2
      %s317 = smul.addr %s316, 2
      %s318 = scalar_lea.vmem %s2, %s317
      %p319 = scmp.lt.s32.totalorder %s21, 1
      %s320 = scalar_select %p319, %s21, 1
      %s321 = smul.addr %s320, 2
      %s322 = smul.addr %s321, 2
      %s323 = scalar_lea.vmem %s3, %s322
      %p324 = scmp.lt.s32.totalorder %s21, 1
      %s325 = scalar_select %p324, %s21, 1
      %p326 = scmp.lt.s32.totalorder %s22, 0
      %s327 = scalar_select %p326, %s22, 0
      %s328 = smul.addr %s325, 2
      %s329 = sadd.s32 %s327, %s328
      %s330 = smul.addr %s329, 8
      %s331 = scalar_lea.vmem %s6, %s330
      %s333 = smul.u32 %s22, 128
      %s334 = sshra.s32 %s333, 7
      %s335 = sand.u32 %s333, 127
      %s336 = smul.addr %s334, 2
      %s337 = scalar_lea.vmem %s308, %s336
      %v338 = vld [vmem:[%s337] sm:$0xf]
      %s339 = smul.addr %s334, 2
      %s340 = scalar_lea.vmem %s313, %s339
      %v341 = vld [vmem:[%s340] sm:$0xf]
      %v342 = vmax.bf16 %v338, %v341
      %s343 = smul.addr %s334, 2
      %s344 = scalar_lea.vmem %s318, %s343
      %v345 = vld [vmem:[%s344] sm:$0xf]
      %v346 = vmax.bf16 %v342, %v345
      %s347 = smul.addr %s334, 2
      %s348 = scalar_lea.vmem %s323, %s347
      %v349 = vld [vmem:[%s348] sm:$0xf]
      %v350 = vmax.bf16 %v346, %v349
      %v351 = vld [vmem:[%s5] sm:$0xff]
      %v352 = vld [vmem:[%s5 + $0x8] sm:$0xff]
      %354 = vset.pattern.permute.xlu0 0
      %355 = vperm.xlu0 %354, %v351
      %v356 = vpop.permute.xlu0 %355
      %359 = vset.pattern.permute.xlu0 0
      %360 = vperm.xlu0 %359, %v352
      %v361 = vpop.permute.xlu0 %360
      %v363 = vld [vmem:[%s4] sm:$0xf]
      %v364 = vld [vmem:[%s4 + $0x4] sm:$0xf]
      %v367 = vunpack.c.l.b16 %v363
      %v368 = vunpack.c.l.b16 %v364
      %v369 = vpack.c.b16 %v368, %v367
      %vm370 = vcmask 31744
      %v372 = vsel %vm370, %v369, 0
      %vm374 = vcmask 1041408
      %v376 = vsel %vm374, %v350, 0
      %378 = vmatprep.subr.bf16.mxu0 0
      %379 = vmatpush1.bf16.msra.mxu0 0
      %380 = vmatprep.subr.bf16.mxu0 0
      %381 = vmatpush1.bf16.msra.mxu0 0
      %382 = vmatprep.subr.bf16.mxu0 0
      %383 = vmatpush1.bf16.msra.mxu0 0
      %384 = vmatprep.subr.bf16.mxu0 0
      %385 = vmatpush1.bf16.msra.mxu0 0
      %386 = vmatprep.subr.bf16.mxu0 0
      %387 = vmatpush1.bf16.msra.mxu0 0
      %388 = vmatprep.subr.bf16.mxu0 0
      %389 = vmatpush1.bf16.msra.mxu0 0
      %390 = vmatprep.subr.bf16.mxu0 0
      %391 = vmatpush1.bf16.msra.mxu0 0
      %392 = vmatprep.subr.bf16.mxu0 0
      %393 = vmatpush1.bf16.msra.mxu0 %v376
      %394 = vmatprep.subr.bf16.mxu0 0
      %395 = vmatpush2.bf16.msra.mxu0 0
      %396 = vmatprep.subr.bf16.mxu0 0
      %397 = vmatpush2.bf16.msra.mxu0 0
      %398 = vmatprep.subr.bf16.mxu0 0
      %399 = vmatpush2.bf16.msra.mxu0 0
      %400 = vmatprep.subr.bf16.mxu0 0
      %401 = vmatpush2.bf16.msra.mxu0 0
      %402 = vmatprep.subr.bf16.mxu0 0
      %403 = vmatpush2.bf16.msra.mxu0 0
      %404 = vmatprep.subr.bf16.mxu0 0
      %405 = vmatpush2.bf16.msra.mxu0 0
      %406 = vmatprep.subr.bf16.mxu0 0
      %407 = vmatpush2.bf16.msra.mxu0 0
      %408 = vmatprep.subr.bf16.mxu0 0
      %409 = vmatpush2.bf16.msra.mxu0 0
      %410 = vmatprep.mubr.bf16.mxu0 0
      %411 = vmatmul.mubr.bf16.gmra.mxu0 %v372
      %v412 = vpop.f32.mrf.mxu0
      %v413 = vadd.f32 0.0, %v412
      %v414 = vpop.f32.mrf.mxu0
      %v415 = vpop.f32.mrf.mxu0
      %v416 = vadd.f32 0.0, %v415
      %v417 = vpop.f32.mrf.mxu0
      %418 = vdwg.mxu0
      %v419 = vadd.f32 %v356, %v413
      %v420 = vadd.f32 %v361, %v416
      %s421 = scalar_lea.vmem %s4, 8
      %v422 = vld [vmem:[%s421] sm:$0xf]
      %v423 = vld [vmem:[%s421 + $0x4] sm:$0xf]
      %v426 = vunpack.c.l.b16 %v422
      %v427 = vunpack.c.l.b16 %v423
      %v428 = vpack.c.b16 %v427, %v426
      %v431 = vunpack.c.l.s4 1983009808
      %v432 = vunpack.c.0.s8 %v431
      %v433 = vlaneseq
      %v434 = vshrl.u32 %v433, 7
      %v435 = vsub.s32 %v432, %v434
      %v436 = vrot.slane %v350, %v435
      %v437 = vcombine.high %v436, %v436
      %438 = vrot.lane.b32.xlu0 %v436, 127
      %v439 = vpop.permute.xlu0 %438
      %440 = vrot.lane.b32.xlu0 %v437, 127
      %v441 = vpop.permute.xlu0 %440
      %vm442 = vcmask 1039360
      %v443 = vsel %vm442, %v439, %v441
      %v445 = vsel %vm370, %v428, 0
      %v448 = vsel %vm374, %v443, 0
      %450 = vmatprep.subr.bf16.mxu0 0
      %451 = vmatpush1.bf16.msra.mxu0 0
      %452 = vmatprep.subr.bf16.mxu0 0
      %453 = vmatpush1.bf16.msra.mxu0 0
      %454 = vmatprep.subr.bf16.mxu0 0
      %455 = vmatpush1.bf16.msra.mxu0 0
      %456 = vmatprep.subr.bf16.mxu0 0
      %457 = vmatpush1.bf16.msra.mxu0 0
      %458 = vmatprep.subr.bf16.mxu0 0
      %459 = vmatpush1.bf16.msra.mxu0 0
      %460 = vmatprep.subr.bf16.mxu0 0
      %461 = vmatpush1.bf16.msra.mxu0 0
      %462 = vmatprep.subr.bf16.mxu0 0
      %463 = vmatpush1.bf16.msra.mxu0 0
      %464 = vmatprep.subr.bf16.mxu0 0
      %465 = vmatpush1.bf16.msra.mxu0 %v448
      %466 = vmatprep.subr.bf16.mxu0 0
      %467 = vmatpush2.bf16.msra.mxu0 0
      %468 = vmatprep.subr.bf16.mxu0 0
      %469 = vmatpush2.bf16.msra.mxu0 0
      %470 = vmatprep.subr.bf16.mxu0 0
      %471 = vmatpush2.bf16.msra.mxu0 0
      %472 = vmatprep.subr.bf16.mxu0 0
      %473 = vmatpush2.bf16.msra.mxu0 0
      %474 = vmatprep.subr.bf16.mxu0 0
      %475 = vmatpush2.bf16.msra.mxu0 0
      %476 = vmatprep.subr.bf16.mxu0 0
      %477 = vmatpush2.bf16.msra.mxu0 0
      %478 = vmatprep.subr.bf16.mxu0 0
      %479 = vmatpush2.bf16.msra.mxu0 0
      %480 = vmatprep.subr.bf16.mxu0 0
      %481 = vmatpush2.bf16.msra.mxu0 0
      %482 = vmatprep.mubr.bf16.mxu0 0
      %483 = vmatmul.mubr.bf16.gmra.mxu0 %v445
      %v484 = vpop.f32.mrf.mxu0
      %v485 = vadd.f32 0.0, %v484
      %v486 = vpop.f32.mrf.mxu0
      %v487 = vpop.f32.mrf.mxu0
      %v488 = vadd.f32 0.0, %v487
      %v489 = vpop.f32.mrf.mxu0
      %490 = vdwg.mxu0
      %v491 = vadd.f32 %v419, %v485
      %v492 = vadd.f32 %v420, %v488
      %s493 = scalar_lea.vmem %s4, 16
      %v494 = vld [vmem:[%s493] sm:$0xf]
      %v495 = vld [vmem:[%s493 + $0x4] sm:$0xf]
      %v498 = vunpack.c.l.b16 %v494
      %v499 = vunpack.c.l.b16 %v495
      %v500 = vpack.c.b16 %v499, %v498
      %501 = vrot.lane.b32.xlu0 %v436, 126
      %v502 = vpop.permute.xlu0 %501
      %503 = vrot.lane.b32.xlu0 %v437, 126
      %v504 = vpop.permute.xlu0 %503
      %vm505 = vcmask 1031168
      %v506 = vsel %vm505, %v502, %v504
      %v508 = vsel %vm370, %v500, 0
      %v511 = vsel %vm374, %v506, 0
      %513 = vmatprep.subr.bf16.mxu0 0
      %514 = vmatpush1.bf16.msra.mxu0 0
      %515 = vmatprep.subr.bf16.mxu0 0
      %516 = vmatpush1.bf16.msra.mxu0 0
      %517 = vmatprep.subr.bf16.mxu0 0
      %518 = vmatpush1.bf16.msra.mxu0 0
      %519 = vmatprep.subr.bf16.mxu0 0
      %520 = vmatpush1.bf16.msra.mxu0 0
      %521 = vmatprep.subr.bf16.mxu0 0
      %522 = vmatpush1.bf16.msra.mxu0 0
      %523 = vmatprep.subr.bf16.mxu0 0
      %524 = vmatpush1.bf16.msra.mxu0 0
      %525 = vmatprep.subr.bf16.mxu0 0
      %526 = vmatpush1.bf16.msra.mxu0 0
      %527 = vmatprep.subr.bf16.mxu0 0
      %528 = vmatpush1.bf16.msra.mxu0 %v511
      %529 = vmatprep.subr.bf16.mxu0 0
      %530 = vmatpush2.bf16.msra.mxu0 0
      %531 = vmatprep.subr.bf16.mxu0 0
      %532 = vmatpush2.bf16.msra.mxu0 0
      %533 = vmatprep.subr.bf16.mxu0 0
      %534 = vmatpush2.bf16.msra.mxu0 0
      %535 = vmatprep.subr.bf16.mxu0 0
      %536 = vmatpush2.bf16.msra.mxu0 0
      %537 = vmatprep.subr.bf16.mxu0 0
      %538 = vmatpush2.bf16.msra.mxu0 0
      %539 = vmatprep.subr.bf16.mxu0 0
      %540 = vmatpush2.bf16.msra.mxu0 0
      %541 = vmatprep.subr.bf16.mxu0 0
      %542 = vmatpush2.bf16.msra.mxu0 0
      %543 = vmatprep.subr.bf16.mxu0 0
      %544 = vmatpush2.bf16.msra.mxu0 0
      %545 = vmatprep.mubr.bf16.mxu0 0
      %546 = vmatmul.mubr.bf16.gmra.mxu0 %v508
      %v547 = vpop.f32.mrf.mxu0
      %v548 = vadd.f32 0.0, %v547
      %v549 = vpop.f32.mrf.mxu0
      %v550 = vpop.f32.mrf.mxu0
      %v551 = vadd.f32 0.0, %v550
      %v552 = vpop.f32.mrf.mxu0
      %553 = vdwg.mxu0
      %v554 = vadd.f32 %v491, %v548
      %v555 = vadd.f32 %v492, %v551
      %s556 = scalar_lea.vmem %s4, 24
      %v557 = vld [vmem:[%s556] sm:$0xf]
      %v558 = vld [vmem:[%s556 + $0x4] sm:$0xf]
      %v561 = vunpack.c.l.b16 %v557
      %v562 = vunpack.c.l.b16 %v558
      %v563 = vpack.c.b16 %v562, %v561
      %564 = vrot.lane.b32.xlu0 %v436, 118
      %v565 = vpop.permute.xlu0 %564
      %566 = vrot.lane.b32.xlu0 %v437, 118
      %v567 = vpop.permute.xlu0 %566
      %vm568 = vcmask 965632
      %v569 = vsel %vm568, %v565, %v567
      %v571 = vsel %vm370, %v563, 0
      %v574 = vsel %vm374, %v569, 0
      %576 = vmatprep.subr.bf16.mxu0 0
      %577 = vmatpush1.bf16.msra.mxu0 0
      %578 = vmatprep.subr.bf16.mxu0 0
      %579 = vmatpush1.bf16.msra.mxu0 0
      %580 = vmatprep.subr.bf16.mxu0 0
      %581 = vmatpush1.bf16.msra.mxu0 0
      %582 = vmatprep.subr.bf16.mxu0 0
      %583 = vmatpush1.bf16.msra.mxu0 0
      %584 = vmatprep.subr.bf16.mxu0 0
      %585 = vmatpush1.bf16.msra.mxu0 0
      %586 = vmatprep.subr.bf16.mxu0 0
      %587 = vmatpush1.bf16.msra.mxu0 0
      %588 = vmatprep.subr.bf16.mxu0 0
      %589 = vmatpush1.bf16.msra.mxu0 0
      %590 = vmatprep.subr.bf16.mxu0 0
      %591 = vmatpush1.bf16.msra.mxu0 %v574
      %592 = vmatprep.subr.bf16.mxu0 0
      %593 = vmatpush2.bf16.msra.mxu0 0
      %594 = vmatprep.subr.bf16.mxu0 0
      %595 = vmatpush2.bf16.msra.mxu0 0
      %596 = vmatprep.subr.bf16.mxu0 0
      %597 = vmatpush2.bf16.msra.mxu0 0
      %598 = vmatprep.subr.bf16.mxu0 0
      %599 = vmatpush2.bf16.msra.mxu0 0
      %600 = vmatprep.subr.bf16.mxu0 0
      %601 = vmatpush2.bf16.msra.mxu0 0
      %602 = vmatprep.subr.bf16.mxu0 0
      %603 = vmatpush2.bf16.msra.mxu0 0
      %604 = vmatprep.subr.bf16.mxu0 0
      %605 = vmatpush2.bf16.msra.mxu0 0
      %606 = vmatprep.subr.bf16.mxu0 0
      %607 = vmatpush2.bf16.msra.mxu0 0
      %608 = vmatprep.mubr.bf16.mxu0 0
      %609 = vmatmul.mubr.bf16.gmra.mxu0 %v571
      %v610 = vpop.f32.mrf.mxu0
      %v611 = vadd.f32 0.0, %v610
      %v612 = vpop.f32.mrf.mxu0
      %v613 = vpop.f32.mrf.mxu0
      %v614 = vadd.f32 0.0, %v613
      %v615 = vpop.f32.mrf.mxu0
      %616 = vdwg.mxu0
      %v617 = vadd.f32 %v554, %v611
      %v618 = vadd.f32 %v555, %v614
      %s619 = scalar_lea.vmem %s4, 32
      %v620 = vld [vmem:[%s619] sm:$0xf]
      %v621 = vld [vmem:[%s619 + $0x4] sm:$0xf]
      %v624 = vunpack.c.l.b16 %v620
      %v625 = vunpack.c.l.b16 %v621
      %v626 = vpack.c.b16 %v625, %v624
      %627 = vrot.lane.b32.xlu0 %v436, 117
      %v628 = vpop.permute.xlu0 %627
      %629 = vrot.lane.b32.xlu0 %v437, 117
      %v630 = vpop.permute.xlu0 %629
      %vm631 = vcmask 957440
      %v632 = vsel %vm631, %v628, %v630
      %v634 = vsel %vm370, %v626, 0
      %v637 = vsel %vm374, %v632, 0
      %639 = vmatprep.subr.bf16.mxu0 0
      %640 = vmatpush1.bf16.msra.mxu0 0
      %641 = vmatprep.subr.bf16.mxu0 0
      %642 = vmatpush1.bf16.msra.mxu0 0
      %643 = vmatprep.subr.bf16.mxu0 0
      %644 = vmatpush1.bf16.msra.mxu0 0
      %645 = vmatprep.subr.bf16.mxu0 0
      %646 = vmatpush1.bf16.msra.mxu0 0
      %647 = vmatprep.subr.bf16.mxu0 0
      %648 = vmatpush1.bf16.msra.mxu0 0
      %649 = vmatprep.subr.bf16.mxu0 0
      %650 = vmatpush1.bf16.msra.mxu0 0
      %651 = vmatprep.subr.bf16.mxu0 0
      %652 = vmatpush1.bf16.msra.mxu0 0
      %653 = vmatprep.subr.bf16.mxu0 0
      %654 = vmatpush1.bf16.msra.mxu0 %v637
      %655 = vmatprep.subr.bf16.mxu0 0
      %656 = vmatpush2.bf16.msra.mxu0 0
      %657 = vmatprep.subr.bf16.mxu0 0
      %658 = vmatpush2.bf16.msra.mxu0 0
      %659 = vmatprep.subr.bf16.mxu0 0
      %660 = vmatpush2.bf16.msra.mxu0 0
      %661 = vmatprep.subr.bf16.mxu0 0
      %662 = vmatpush2.bf16.msra.mxu0 0
      %663 = vmatprep.subr.bf16.mxu0 0
      %664 = vmatpush2.bf16.msra.mxu0 0
      %665 = vmatprep.subr.bf16.mxu0 0
      %666 = vmatpush2.bf16.msra.mxu0 0
      %667 = vmatprep.subr.bf16.mxu0 0
      %668 = vmatpush2.bf16.msra.mxu0 0
      %669 = vmatprep.subr.bf16.mxu0 0
      %670 = vmatpush2.bf16.msra.mxu0 0
      %671 = vmatprep.mubr.bf16.mxu0 0
      %672 = vmatmul.mubr.bf16.gmra.mxu0 %v634
      %v673 = vpop.f32.mrf.mxu0
      %v674 = vadd.f32 0.0, %v673
      %v675 = vpop.f32.mrf.mxu0
      %v676 = vpop.f32.mrf.mxu0
      %v677 = vadd.f32 0.0, %v676
      %v678 = vpop.f32.mrf.mxu0
      %679 = vdwg.mxu0
      %v680 = vadd.f32 %v617, %v674
      %v681 = vadd.f32 %v618, %v677
      %s682 = scalar_lea.vmem %s4, 40
      %v683 = vld [vmem:[%s682] sm:$0xf]
      %v684 = vld [vmem:[%s682 + $0x4] sm:$0xf]
      %v687 = vunpack.c.l.b16 %v683
      %v688 = vunpack.c.l.b16 %v684
      %v689 = vpack.c.b16 %v688, %v687
      %690 = vrot.lane.b32.xlu0 %v436, 116
      %v691 = vpop.permute.xlu0 %690
      %692 = vrot.lane.b32.xlu0 %v437, 116
      %v693 = vpop.permute.xlu0 %692
      %vm694 = vcmask 949248
      %v695 = vsel %vm694, %v691, %v693
      %v697 = vsel %vm370, %v689, 0
      %v700 = vsel %vm374, %v695, 0
      %702 = vmatprep.subr.bf16.mxu0 0
      %703 = vmatpush1.bf16.msra.mxu0 0
      %704 = vmatprep.subr.bf16.mxu0 0
      %705 = vmatpush1.bf16.msra.mxu0 0
      %706 = vmatprep.subr.bf16.mxu0 0
      %707 = vmatpush1.bf16.msra.mxu0 0
      %708 = vmatprep.subr.bf16.mxu0 0
      %709 = vmatpush1.bf16.msra.mxu0 0
      %710 = vmatprep.subr.bf16.mxu0 0
      %711 = vmatpush1.bf16.msra.mxu0 0
      %712 = vmatprep.subr.bf16.mxu0 0
      %713 = vmatpush1.bf16.msra.mxu0 0
      %714 = vmatprep.subr.bf16.mxu0 0
      %715 = vmatpush1.bf16.msra.mxu0 0
      %716 = vmatprep.subr.bf16.mxu0 0
      %717 = vmatpush1.bf16.msra.mxu0 %v700
      %718 = vmatprep.subr.bf16.mxu0 0
      %719 = vmatpush2.bf16.msra.mxu0 0
      %720 = vmatprep.subr.bf16.mxu0 0
      %721 = vmatpush2.bf16.msra.mxu0 0
      %722 = vmatprep.subr.bf16.mxu0 0
      %723 = vmatpush2.bf16.msra.mxu0 0
      %724 = vmatprep.subr.bf16.mxu0 0
      %725 = vmatpush2.bf16.msra.mxu0 0
      %726 = vmatprep.subr.bf16.mxu0 0
      %727 = vmatpush2.bf16.msra.mxu0 0
      %728 = vmatprep.subr.bf16.mxu0 0
      %729 = vmatpush2.bf16.msra.mxu0 0
      %730 = vmatprep.subr.bf16.mxu0 0
      %731 = vmatpush2.bf16.msra.mxu0 0
      %732 = vmatprep.subr.bf16.mxu0 0
      %733 = vmatpush2.bf16.msra.mxu0 0
      %734 = vmatprep.mubr.bf16.mxu0 0
      %735 = vmatmul.mubr.bf16.gmra.mxu0 %v697
      %v736 = vpop.f32.mrf.mxu0
      %v737 = vadd.f32 0.0, %v736
      %v738 = vpop.f32.mrf.mxu0
      %v739 = vpop.f32.mrf.mxu0
      %v740 = vadd.f32 0.0, %v739
      %v741 = vpop.f32.mrf.mxu0
      %742 = vdwg.mxu0
      %v743 = vadd.f32 %v680, %v737
      %v744 = vadd.f32 %v681, %v740
      %s745 = scalar_lea.vmem %s4, 48
      %v746 = vld [vmem:[%s745] sm:$0xf]
      %v747 = vld [vmem:[%s745 + $0x4] sm:$0xf]
      %v750 = vunpack.c.l.b16 %v746
      %v751 = vunpack.c.l.b16 %v747
      %v752 = vpack.c.b16 %v751, %v750
      %753 = vrot.lane.b32.xlu0 %v436, 108
      %v754 = vpop.permute.xlu0 %753
      %755 = vrot.lane.b32.xlu0 %v437, 108
      %v756 = vpop.permute.xlu0 %755
      %vm757 = vcmask 883712
      %v758 = vsel %vm757, %v754, %v756
      %v760 = vsel %vm370, %v752, 0
      %v763 = vsel %vm374, %v758, 0
      %765 = vmatprep.subr.bf16.mxu0 0
      %766 = vmatpush1.bf16.msra.mxu0 0
      %767 = vmatprep.subr.bf16.mxu0 0
      %768 = vmatpush1.bf16.msra.mxu0 0
      %769 = vmatprep.subr.bf16.mxu0 0
      %770 = vmatpush1.bf16.msra.mxu0 0
      %771 = vmatprep.subr.bf16.mxu0 0
      %772 = vmatpush1.bf16.msra.mxu0 0
      %773 = vmatprep.subr.bf16.mxu0 0
      %774 = vmatpush1.bf16.msra.mxu0 0
      %775 = vmatprep.subr.bf16.mxu0 0
      %776 = vmatpush1.bf16.msra.mxu0 0
      %777 = vmatprep.subr.bf16.mxu0 0
      %778 = vmatpush1.bf16.msra.mxu0 0
      %779 = vmatprep.subr.bf16.mxu0 0
      %780 = vmatpush1.bf16.msra.mxu0 %v763
      %781 = vmatprep.subr.bf16.mxu0 0
      %782 = vmatpush2.bf16.msra.mxu0 0
      %783 = vmatprep.subr.bf16.mxu0 0
      %784 = vmatpush2.bf16.msra.mxu0 0
      %785 = vmatprep.subr.bf16.mxu0 0
      %786 = vmatpush2.bf16.msra.mxu0 0
      %787 = vmatprep.subr.bf16.mxu0 0
      %788 = vmatpush2.bf16.msra.mxu0 0
      %789 = vmatprep.subr.bf16.mxu0 0
      %790 = vmatpush2.bf16.msra.mxu0 0
      %791 = vmatprep.subr.bf16.mxu0 0
      %792 = vmatpush2.bf16.msra.mxu0 0
      %793 = vmatprep.subr.bf16.mxu0 0
      %794 = vmatpush2.bf16.msra.mxu0 0
      %795 = vmatprep.subr.bf16.mxu0 0
      %796 = vmatpush2.bf16.msra.mxu0 0
      %797 = vmatprep.mubr.bf16.mxu0 0
      %798 = vmatmul.mubr.bf16.gmra.mxu0 %v760
      %v799 = vpop.f32.mrf.mxu0
      %v800 = vadd.f32 0.0, %v799
      %v801 = vpop.f32.mrf.mxu0
      %v802 = vpop.f32.mrf.mxu0
      %v803 = vadd.f32 0.0, %v802
      %v804 = vpop.f32.mrf.mxu0
      %805 = vdwg.mxu0
      %v806 = vadd.f32 %v743, %v800
      %v807 = vadd.f32 %v744, %v803
      %s808 = scalar_lea.vmem %s4, 56
      %v809 = vld [vmem:[%s808] sm:$0xf]
      %v810 = vld [vmem:[%s808 + $0x4] sm:$0xf]
      %v813 = vunpack.c.l.b16 %v809
      %v814 = vunpack.c.l.b16 %v810
      %v815 = vpack.c.b16 %v814, %v813
      %816 = vrot.lane.b32.xlu0 %v436, 107
      %v817 = vpop.permute.xlu0 %816
      %818 = vrot.lane.b32.xlu0 %v437, 107
      %v819 = vpop.permute.xlu0 %818
      %vm820 = vcmask 875520
      %v821 = vsel %vm820, %v817, %v819
      %v823 = vsel %vm370, %v815, 0
      %v826 = vsel %vm374, %v821, 0
      %828 = vmatprep.subr.bf16.mxu0 0
      %829 = vmatpush1.bf16.msra.mxu0 0
      %830 = vmatprep.subr.bf16.mxu0 0
      %831 = vmatpush1.bf16.msra.mxu0 0
      %832 = vmatprep.subr.bf16.mxu0 0
      %833 = vmatpush1.bf16.msra.mxu0 0
      %834 = vmatprep.subr.bf16.mxu0 0
      %835 = vmatpush1.bf16.msra.mxu0 0
      %836 = vmatprep.subr.bf16.mxu0 0
      %837 = vmatpush1.bf16.msra.mxu0 0
      %838 = vmatprep.subr.bf16.mxu0 0
      %839 = vmatpush1.bf16.msra.mxu0 0
      %840 = vmatprep.subr.bf16.mxu0 0
      %841 = vmatpush1.bf16.msra.mxu0 0
      %842 = vmatprep.subr.bf16.mxu0 0
      %843 = vmatpush1.bf16.msra.mxu0 %v826
      %844 = vmatprep.subr.bf16.mxu0 0
      %845 = vmatpush2.bf16.msra.mxu0 0
      %846 = vmatprep.subr.bf16.mxu0 0
      %847 = vmatpush2.bf16.msra.mxu0 0
      %848 = vmatprep.subr.bf16.mxu0 0
      %849 = vmatpush2.bf16.msra.mxu0 0
      %850 = vmatprep.subr.bf16.mxu0 0
      %851 = vmatpush2.bf16.msra.mxu0 0
      %852 = vmatprep.subr.bf16.mxu0 0
      %853 = vmatpush2.bf16.msra.mxu0 0
      %854 = vmatprep.subr.bf16.mxu0 0
      %855 = vmatpush2.bf16.msra.mxu0 0
      %856 = vmatprep.subr.bf16.mxu0 0
      %857 = vmatpush2.bf16.msra.mxu0 0
      %858 = vmatprep.subr.bf16.mxu0 0
      %859 = vmatpush2.bf16.msra.mxu0 0
      %860 = vmatprep.mubr.bf16.mxu0 0
      %861 = vmatmul.mubr.bf16.gmra.mxu0 %v823
      %v862 = vpop.f32.mrf.mxu0
      %v863 = vadd.f32 0.0, %v862
      %v864 = vpop.f32.mrf.mxu0
      %v865 = vpop.f32.mrf.mxu0
      %v866 = vadd.f32 0.0, %v865
      %v867 = vpop.f32.mrf.mxu0
      %868 = vdwg.mxu0
      %v869 = vadd.f32 %v806, %v863
      %v870 = vadd.f32 %v807, %v866
      %s871 = scalar_lea.vmem %s4, 64
      %v872 = vld [vmem:[%s871] sm:$0xf]
      %v873 = vld [vmem:[%s871 + $0x4] sm:$0xf]
      %v876 = vunpack.c.l.b16 %v872
      %v877 = vunpack.c.l.b16 %v873
      %v878 = vpack.c.b16 %v877, %v876
      %879 = vrot.lane.b32.xlu0 %v436, 106
      %v880 = vpop.permute.xlu0 %879
      %881 = vrot.lane.b32.xlu0 %v437, 106
      %v882 = vpop.permute.xlu0 %881
      %vm883 = vcmask 867328
      %v884 = vsel %vm883, %v880, %v882
      %v886 = vsel %vm370, %v878, 0
      %v889 = vsel %vm374, %v884, 0
      %891 = vmatprep.subr.bf16.mxu0 0
      %892 = vmatpush1.bf16.msra.mxu0 0
      %893 = vmatprep.subr.bf16.mxu0 0
      %894 = vmatpush1.bf16.msra.mxu0 0
      %895 = vmatprep.subr.bf16.mxu0 0
      %896 = vmatpush1.bf16.msra.mxu0 0
      %897 = vmatprep.subr.bf16.mxu0 0
      %898 = vmatpush1.bf16.msra.mxu0 0
      %899 = vmatprep.subr.bf16.mxu0 0
      %900 = vmatpush1.bf16.msra.mxu0 0
      %901 = vmatprep.subr.bf16.mxu0 0
      %902 = vmatpush1.bf16.msra.mxu0 0
      %903 = vmatprep.subr.bf16.mxu0 0
      %904 = vmatpush1.bf16.msra.mxu0 0
      %905 = vmatprep.subr.bf16.mxu0 0
      %906 = vmatpush1.bf16.msra.mxu0 %v889
      %907 = vmatprep.subr.bf16.mxu0 0
      %908 = vmatpush2.bf16.msra.mxu0 0
      %909 = vmatprep.subr.bf16.mxu0 0
      %910 = vmatpush2.bf16.msra.mxu0 0
      %911 = vmatprep.subr.bf16.mxu0 0
      %912 = vmatpush2.bf16.msra.mxu0 0
      %913 = vmatprep.subr.bf16.mxu0 0
      %914 = vmatpush2.bf16.msra.mxu0 0
      %915 = vmatprep.subr.bf16.mxu0 0
      %916 = vmatpush2.bf16.msra.mxu0 0
      %917 = vmatprep.subr.bf16.mxu0 0
      %918 = vmatpush2.bf16.msra.mxu0 0
      %919 = vmatprep.subr.bf16.mxu0 0
      %920 = vmatpush2.bf16.msra.mxu0 0
      %921 = vmatprep.subr.bf16.mxu0 0
      %922 = vmatpush2.bf16.msra.mxu0 0
      %923 = vmatprep.mubr.bf16.mxu0 0
      %924 = vmatmul.mubr.bf16.gmra.mxu0 %v886
      %v925 = vpop.f32.mrf.mxu0
      %v926 = vadd.f32 0.0, %v925
      %v927 = vpop.f32.mrf.mxu0
      %v928 = vpop.f32.mrf.mxu0
      %v929 = vadd.f32 0.0, %v928
      %v930 = vpop.f32.mrf.mxu0
      %931 = vdwg.mxu0
      %v932 = vadd.f32 %v869, %v926
      %v933 = vadd.f32 %v870, %v929
      %v934 = vmax.f32 %v932, 0.0
      %v935 = vmax.f32 %v933, 0.0
      %936 = vst [vmem:[%s331] sm:$0xff] %v934
      %937 = vst [vmem:[%s331 + $0x8] sm:$0xff] %v935
      %p938 = scmp.lt.s32.totalorder %s21, 1
      %s939 = scalar_select %p938, %s21, 1
      %p940 = scmp.lt.s32.totalorder %s22, 0
      %s941 = scalar_select %p940, %s22, 0
      %s942 = smul.addr %s939, 2
      %s943 = sadd.s32 %s941, %s942
      %s944 = smul.addr %s943, 8
      %s945 = scalar_lea.vmem %s6, %s944
      // Predicated region
      $region45: #{start_transition_forward.3} parent=43 // pred_check
        %p946 = pneg %p195
      $region46: #{start_transition_forward.3} parent=43 // pred_check_branch
        %948 = sbr.rel (%p946) target = $region48
      $region47: #{start_transition_forward.3} parent=43 // pred_region
        _
      $region48: #{start_transition_forward.3} parent=43 // pred_fallthru
        _
    $region44: #{start_transition_forward.3} parent=5 // pred_fallthru
      _
    %p949 = scmp.le.s32.totalorder 2, %s12
    // Predicated region
    $region49: #{start_transition_forward.3} parent=5 // pred_check
      %p950 = pneg %p949
    $region50: #{start_transition_forward.3} parent=5 // pred_check_branch
      %952 = sbr.rel (%p950) target = $region52
    $region51: #{start_transition_forward.3} parent=5 // pred_region
      %s953 = ssub.s32 %s12, 2
      // Predicated region
      $region53: #{start_transition_forward.3} parent=51 // pred_check
        %p954 = pneg %p201
      $region54: #{start_transition_forward.3} parent=51 // pred_check_branch
        %956 = sbr.rel (%p954) target = $region56
      $region55: #{start_transition_forward.3} parent=51 // pred_region
        %p957 = scmp.lt.s32.totalorder %s23, 1
        %s958 = scalar_select %p957, %s23, 1
        %p959 = scmp.lt.s32.totalorder %s24, 0
        %s960 = scalar_select %p959, %s24, 0
        %s961 = smul.addr %s958, 2
        %s962 = sadd.s32 %s960, %s961
        %s963 = smul.addr %s962, 8
        %s964 = scalar_lea.vmem %s6, %s963
      $region56: #{start_transition_forward.3} parent=51 // pred_fallthru
        _
    $region52: #{start_transition_forward.3} parent=5 // pred_fallthru
      _
  $region6: #{start_transition_forward.3} parent=0 // loop_footer
    %s16 = sadd.s32 1, %s12
  $region7: #{start_transition_forward.3} parent=0 // loop_footer_branch
    %11 = sbr.rel target = $region3
  $region8: #{start_transition_forward.3} parent=0 // loop_exit
    _

</llo_original>
